<compile_context>
chip_gen: v6e
topology: v6e:2x2x1
jax: 0.10.0
libtpu: 0.0.40
codegen_flags: <defaults>
</compile_context>

<pallas_src>
import jax
import jax.numpy as jnp
from jax import lax
from jax.experimental import pallas as pl
from jax.experimental.pallas import tpu as pltpu


def bottleneck_kernel(xt_ref, xb_ref, xo_ref,   # top-halo row / body / bottom-halo row (bf16)
                      s1_ref, o1_ref,           # folded BN1 scale/bias            (1, Cin)   f32
                      w1_ref,                   # conv1 1x1 weight                 (Cin, P)   bf16
                      s2_ref, o2_ref,           # folded BN2 scale / bias+s2*b1    (1, P)     f32
                      w2_ref,                   # conv2 weight, dx packed          (3, 3P, P) bf16
                      s3_ref, o3_ref,           # folded BN3 scale / bias+s3*b2    (1, P)     f32
                      w3_ref, b3_ref,           # conv3 1x1 weight / bias          (P, Cout) bf16 / (1, Cout) f32
                      o_ref):                   # output block                     (1, TH, W, Cout) bf16
    TH = xb_ref.shape[1]
    W = xb_ref.shape[2]
    Cin = xb_ref.shape[3]
    P = w1_ref.shape[1]
    Cout = w3_ref.shape[1]
    THP = TH + 2
    HW = THP * W

    i = pl.program_id(1)
    last = pl.num_programs(1) - 1

    # Assemble the (TH+2, W, Cin) haloed tile in f32 (bf16 in HBM/VMEM).
    x_body = xb_ref[0].astype(jnp.float32)                                  # (TH, W, Cin)
    x_full = jnp.concatenate(
        [xt_ref[0].astype(jnp.float32), x_body, xo_ref[0].astype(jnp.float32)],
        axis=0)                                                             # (TH+2, W, Cin)

    # ---- BN1 + ReLU (f32), conv1 (1x1) as one dense MXU matmul over all
    #      TH+2 rows (halo rows included: conv2 needs their conv1 output) ----
    a = jnp.maximum(x_full * s1_ref[...] + o1_ref[...], 0.0)
    y1 = jnp.dot(a.reshape(HW, Cin).astype(jnp.bfloat16), w1_ref[...],
                 preferred_element_type=jnp.float32)                        # (HW, P) f32

    # ---- BN2 + ReLU (conv1 bias folded into o2 on the host) ----
    a = jnp.maximum(y1 * s2_ref[...] + o2_ref[...], 0.0).reshape(THP, W, P)

    # Zero the halo rows that correspond to conv2's zero padding at the image
    # top/bottom (tile 0 / last tile); interior halos carry real neighbor data.
    r = lax.broadcasted_iota(jnp.int32, (THP, 1, 1), 0)
    keep = jnp.logical_and(jnp.logical_or(r != 0, i > 0),
                           jnp.logical_or(r != THP - 1, i < last))
    a = jnp.where(keep, a, 0.0)                                             # f32 (THP, W, P)

    # ---- conv2 (3x3, pad=1, stride=1): pack the three dx taps onto the lane
    #      (channel) axis.  W-shifts ride the XLU (roll) + a VALU select
    #      instead of unaligned sublane concats; the wide im2col slab is bf16. ----
    w_idx = lax.broadcasted_iota(jnp.int32, (1, W, 1), 1)
    left = jnp.where(w_idx > 0, pltpu.roll(a, 1, axis=1), 0.0)              # value at w-1
    right = jnp.where(w_idx < W - 1, pltpu.roll(a, W - 1, axis=1), 0.0)     # value at w+1
    u = jnp.concatenate([left.astype(jnp.bfloat16),
                         a.astype(jnp.bfloat16),
                         right.astype(jnp.bfloat16)], axis=-1)              # (TH+2, W, 3P) bf16

    # Accumulator initialized from the dy=0 matmul (no zero-fill); windows
    # slide only along the leading H axis.
    acc = jnp.dot(u[0:TH].reshape(TH * W, 3 * P), w2_ref[0],
                  preferred_element_type=jnp.float32)                       # (TH*W, P)
    for dy in (1, 2):                                                       # static unroll
        acc = acc + jnp.dot(u[dy:dy + TH].reshape(TH * W, 3 * P), w2_ref[dy],
                            preferred_element_type=jnp.float32)

    # ---- BN3 + ReLU (conv2 bias folded into o3), conv3 (1x1) + b3 ----
    a = jnp.maximum(acc * s3_ref[...] + o3_ref[...], 0.0)                   # (TH*W, P)
    y3 = jnp.dot(a.astype(jnp.bfloat16), w3_ref[...],
                 preferred_element_type=jnp.float32) + b3_ref[...]          # (TH*W, Cout)

    # ---- residual add with the raw input (body rows only), store bf16 ----
    o_ref[0] = (y3.reshape(TH, W, Cout) + x_body).astype(o_ref.dtype)


def bottleneck_pallas(x_nhwc, params, *, th=None):
    """x_nhwc: (N, H, W, Cin) bf16 (cast if needed). Returns (N, H, W, Cout) bf16."""
    x_nhwc = x_nhwc.astype(jnp.bfloat16)
    N, H, W, Cin = x_nhwc.shape
    P = params["w1"].shape[1]
    Cout = params["w3"].shape[1]
    assert Cin == Cout, "Bottleneck residual path requires inplanes == 2*planes"

    if th is None:
        th = 8 if H % 8 == 0 else H        # production: pick TH from the VMEM budget
    assert H % th == 0
    n_h = H // th

    const = lambda shape: pl.BlockSpec(shape, lambda n, i: tuple(0 for _ in shape))

    # Body tile plus 1-row halos above/below.  The halo index_maps clamp at
    # the image edges; those rows are masked to zero in-kernel (they stand in
    # for conv2's zero padding), so the clamped values never matter.
    body_spec = pl.BlockSpec((1, th, W, Cin), lambda n, i: (n, i, 0, 0))
    top_spec = pl.BlockSpec((1, 1, W, Cin),
                            lambda n, i: (n, jnp.maximum(i * th - 1, 0), 0, 0))
    bot_spec = pl.BlockSpec((1, 1, W, Cin),
                            lambda n, i: (n, jnp.minimum(i * th + th, H - 1), 0, 0))

    in_specs = [
        top_spec, body_spec, bot_spec,
        const((1, Cin)), const((1, Cin)),            # bn1 scale / bias
        const((Cin, P)),                             # conv1 weight
        const((1, P)), const((1, P)),                # bn2 scale / bias (+ s2*b1)
        const((3, 3 * P, P)),                        # conv2 weight, dx packed
        const((1, P)), const((1, P)),                # bn3 scale / bias (+ s3*b2)
        const((P, Cout)), const((1, Cout)),          # conv3 weight / bias
    ]
    out_spec = pl.BlockSpec((1, th, W, Cout), lambda n, i: (n, i, 0, 0))

    return pl.pallas_call(
        bottleneck_kernel,
        out_shape=jax.ShapeDtypeStruct((N, H, W, Cout), jnp.bfloat16),
        grid=(N, n_h),
        in_specs=in_specs,
        out_specs=out_spec,
        compiler_params=pltpu.CompilerParams(
            dimension_semantics=("parallel", "parallel"),
            vmem_limit_bytes=48 * 1024 * 1024),
    )(x_nhwc, x_nhwc, x_nhwc,
      params["s1"], params["o1"], params["w1"],
      params["s2"], params["o2"], params["w2"],
      params["s3"], params["o3"], params["w3"], params["b3"])


# ------------------------- parameter construction -------------------------

def fold_bn(gamma, beta, mean, var, eps=1e-5):
    scale = gamma / jnp.sqrt(var + eps)
    bias = beta - mean * scale
    return scale.reshape(1, -1), bias.reshape(1, -1)


def make_params(key, inplanes, planes):
    Cout = planes * 2
    ks = jax.random.split(key, 9)

    def bn_params(k, c):
        k1, k2, k3, k4 = jax.random.split(k, 4)
        gamma = 1.0 + 0.1 * jax.random.normal(k1, (c,), jnp.float32)
        beta = 0.1 * jax.random.normal(k2, (c,), jnp.float32)
        mean = 0.1 * jax.random.normal(k3, (c,), jnp.float32)
        var = 0.5 + jnp.abs(jax.random.normal(k4, (c,), jnp.float32))
        return gamma, beta, mean, var

    # PyTorch conv weight layout: (out, in, kh, kw)
    w1_t = 0.3 * jax.random.normal(ks[0], (planes, inplanes, 1, 1), jnp.float32)
    b1 = 0.1 * jax.random.normal(ks[1], (planes,), jnp.float32)
    w2_t = 0.3 * jax.random.normal(ks[2], (planes, planes, 3, 3), jnp.float32)
    b2 = 0.1 * jax.random.normal(ks[3], (planes,), jnp.float32)
    w3_t = 0.3 * jax.random.normal(ks[4], (Cout, planes, 1, 1), jnp.float32)
    b3 = 0.1 * jax.random.normal(ks[5], (Cout,), jnp.float32)

    g1, be1, m1, v1 = bn_params(ks[6], inplanes)
    g2, be2, m2, v2 = bn_params(ks[7], planes)
    g3, be3, m3, v3 = bn_params(ks[8], planes)

    s1, o1 = fold_bn(g1, be1, m1, v1)
    s2, o2 = fold_bn(g2, be2, m2, v2)
    s3, o3 = fold_bn(g3, be3, m3, v3)

    # Fold conv biases into the next folded-BN bias:
    #   bn(conv(x) + b) = scale*conv(x) + (bias + scale*b)
    o2 = o2 + s2 * b1.reshape(1, -1)
    o3 = o3 + s3 * b2.reshape(1, -1)

    w2_hwio = jnp.transpose(w2_t, (2, 3, 1, 0))          # (kh, kw, in, out)
    params = dict(
        # MXU weights in bf16 (accumulation stays f32); BN params stay f32.
        w1=jnp.transpose(w1_t[:, :, 0, 0], (1, 0)).astype(jnp.bfloat16),     # (Cin, P)
        w2=w2_hwio.reshape(3, 3 * planes, planes).astype(jnp.bfloat16),      # (kh, kw*in, out)
        w2_hwio=w2_hwio.astype(jnp.bfloat16),                                # reference only
        w3=jnp.transpose(w3_t[:, :, 0, 0], (1, 0)).astype(jnp.bfloat16),     # (P, Cout)
        b3=b3.reshape(1, -1),
        s1=s1, o1=o1, s2=s2, o2=o2, s3=s3, o3=o3,
    )
    return params


# --------------------------- pure-JAX reference ---------------------------
# Same mixed-precision policy as the kernel: bf16 x, bf16 operands at the
# matmul/conv boundaries, f32 accumulation, f32 elementwise / residual.
# TODO(synk): BatchNorm is implemented in inference form (running stats);
# training-mode batch statistics are not computed.

def bottleneck_ref(x_nhwc_bf16, p):
    f32 = jnp.float32
    x = x_nhwc_bf16.astype(f32)
    t = jax.nn.relu(x * p["s1"] + p["o1"])
    t = jnp.einsum("nhwc,co->nhwo", t.astype(jnp.bfloat16), p["w1"],
                   preferred_element_type=f32)
    t = jax.nn.relu(t * p["s2"] + p["o2"])
    t = lax.conv_general_dilated(
        t.astype(jnp.bfloat16), p["w2_hwio"], window_strides=(1, 1),
        padding="SAME", dimension_numbers=("NHWC", "HWIO", "NHWC"),
        preferred_element_type=f32)
    t = jax.nn.relu(t * p["s3"] + p["o3"])
    t = jnp.einsum("nhwc,co->nhwo", t.astype(jnp.bfloat16), p["w3"],
                   preferred_element_type=f32) + p["b3"]
    return t + x


if __name__ == "__main__":
    N, inplanes, H, W = 2, 4, 16, 16
    planes = inplanes // 2           # expansion = 2 -> residual shapes match

    key = jax.random.PRNGKey(0)
    kx, kp = jax.random.split(key)
    x_nchw = jax.random.normal(kx, (N, inplanes, H, W), jnp.float32)
    params = make_params(kp, inplanes, planes)

    # NCHW -> NHWC, bf16 at the kernel boundary (halves HBM I/O bytes).
    x_nhwc = jnp.transpose(x_nchw, (0, 2, 3, 1)).astype(jnp.bfloat16)

    out_nhwc = bottleneck_pallas(x_nhwc, params)          # bf16
    out_nchw = jnp.transpose(out_nhwc.astype(jnp.float32), (0, 3, 1, 2))
    jax.block_until_ready(out_nchw)

    ref_nchw = jnp.transpose(bottleneck_ref(x_nhwc, params), (0, 3, 1, 2))
    assert out_nchw.shape == (N, planes * 2, H, W)
    assert jnp.allclose(out_nchw, ref_nchw, atol=3e-2, rtol=3e-2), "mismatch vs reference"

    print("KERNEL_OK")
</pallas_src>

<mosaic_0001>
module attributes {stable_mosaic.version = 11 : i64} {
  func.func @bottleneck_kernel(%arg0: i32, %arg1: i32, %arg2: memref<1x1x16x4xbf16, #tpu.memory_space<vmem>>, %arg3: memref<1x8x16x4xbf16, #tpu.memory_space<vmem>>, %arg4: memref<1x1x16x4xbf16, #tpu.memory_space<vmem>>, %arg5: memref<1x4xf32, #tpu.memory_space<vmem>>, %arg6: memref<1x4xf32, #tpu.memory_space<vmem>>, %arg7: memref<4x2xbf16, #tpu.memory_space<vmem>>, %arg8: memref<1x2xf32, #tpu.memory_space<vmem>>, %arg9: memref<1x2xf32, #tpu.memory_space<vmem>>, %arg10: memref<3x6x2xbf16, #tpu.memory_space<vmem>>, %arg11: memref<1x2xf32, #tpu.memory_space<vmem>>, %arg12: memref<1x2xf32, #tpu.memory_space<vmem>>, %arg13: memref<2x4xbf16, #tpu.memory_space<vmem>>, %arg14: memref<1x4xf32, #tpu.memory_space<vmem>>, %arg15: memref<1x8x16x4xbf16, #tpu.memory_space<vmem>>) attributes {dimension_semantics = [#tpu.dimension_semantics<parallel>, #tpu.dimension_semantics<parallel>], iteration_bounds = array<i64: 2, 2>, scalar_prefetch = 0 : i64, scratch_operands = 0 : i64, tpu.core_type = #tpu.core_type<tc>, window_params = [{transform_indices = @transform_0, window_bounds = array<i64: 1, 1, 16, 4>}, {transform_indices = @transform_1, window_bounds = array<i64: 1, 8, 16, 4>}, {transform_indices = @transform_2, window_bounds = array<i64: 1, 1, 16, 4>}, {pipeline_mode = #tpu.pipeline_mode<synchronous>, transform_indices = @transform_3, window_bounds = array<i64: 1, 4>}, {pipeline_mode = #tpu.pipeline_mode<synchronous>, transform_indices = @transform_4, window_bounds = array<i64: 1, 4>}, {pipeline_mode = #tpu.pipeline_mode<synchronous>, transform_indices = @transform_5, window_bounds = array<i64: 4, 2>}, {pipeline_mode = #tpu.pipeline_mode<synchronous>, transform_indices = @transform_6, window_bounds = array<i64: 1, 2>}, {pipeline_mode = #tpu.pipeline_mode<synchronous>, transform_indices = @transform_7, window_bounds = array<i64: 1, 2>}, {pipeline_mode = #tpu.pipeline_mode<synchronous>, transform_indices = @transform_8, window_bounds = array<i64: 3, 6, 2>}, {pipeline_mode = #tpu.pipeline_mode<synchronous>, transform_indices = @transform_9, window_bounds = array<i64: 1, 2>}, {pipeline_mode = #tpu.pipeline_mode<synchronous>, transform_indices = @transform_10, window_bounds = array<i64: 1, 2>}, {pipeline_mode = #tpu.pipeline_mode<synchronous>, transform_indices = @transform_11, window_bounds = array<i64: 2, 4>}, {pipeline_mode = #tpu.pipeline_mode<synchronous>, transform_indices = @transform_12, window_bounds = array<i64: 1, 4>}, {transform_indices = @transform_13, window_bounds = array<i64: 1, 8, 16, 4>}]} {
    %c0 = arith.constant 0 : index
    %c0_0 = arith.constant 0 : index
    %c0_1 = arith.constant 0 : index
    %c0_2 = arith.constant 0 : index
    %0 = vector.load %arg3[%c0, %c0_0, %c0_1, %c0_2] : memref<1x8x16x4xbf16, #tpu.memory_space<vmem>>, vector<1x8x16x4xbf16>
    %1 = vector.shape_cast %0 : vector<1x8x16x4xbf16> to vector<8x16x4xbf16>
    %2 = arith.extf %1 : vector<8x16x4xbf16> to vector<8x16x4xf32>
    %c0_3 = arith.constant 0 : index
    %c0_4 = arith.constant 0 : index
    %c0_5 = arith.constant 0 : index
    %c0_6 = arith.constant 0 : index
    %3 = vector.load %arg2[%c0_3, %c0_4, %c0_5, %c0_6] : memref<1x1x16x4xbf16, #tpu.memory_space<vmem>>, vector<1x1x16x4xbf16>
    %4 = vector.shape_cast %3 : vector<1x1x16x4xbf16> to vector<1x16x4xbf16>
    %5 = arith.extf %4 : vector<1x16x4xbf16> to vector<1x16x4xf32>
    %c0_7 = arith.constant 0 : index
    %c0_8 = arith.constant 0 : index
    %c0_9 = arith.constant 0 : index
    %c0_10 = arith.constant 0 : index
    %6 = vector.load %arg4[%c0_7, %c0_8, %c0_9, %c0_10] : memref<1x1x16x4xbf16, #tpu.memory_space<vmem>>, vector<1x1x16x4xbf16>
    %7 = vector.shape_cast %6 : vector<1x1x16x4xbf16> to vector<1x16x4xbf16>
    %8 = arith.extf %7 : vector<1x16x4xbf16> to vector<1x16x4xf32>
    %9 = tpu.concatenate %5, %2, %8 in 0 : vector<1x16x4xf32>, vector<8x16x4xf32>, vector<1x16x4xf32> -> vector<10x16x4xf32>
    %c0_11 = arith.constant 0 : index
    %c0_12 = arith.constant 0 : index
    %10 = vector.load %arg5[%c0_11, %c0_12] : memref<1x4xf32, #tpu.memory_space<vmem>>, vector<1x4xf32>
    %11 = vector.shape_cast %10 : vector<1x4xf32> to vector<1x1x4xf32>
    %12 = vector.broadcast %11 : vector<1x1x4xf32> to vector<10x16x4xf32>
    %13 = arith.mulf %9, %12 : vector<10x16x4xf32>
    %c0_13 = arith.constant 0 : index
    %c0_14 = arith.constant 0 : index
    %14 = vector.load %arg6[%c0_13, %c0_14] : memref<1x4xf32, #tpu.memory_space<vmem>>, vector<1x4xf32>
    %15 = vector.shape_cast %14 : vector<1x4xf32> to vector<1x1x4xf32>
    %16 = vector.broadcast %15 : vector<1x1x4xf32> to vector<10x16x4xf32>
    %17 = arith.addf %13, %16 : vector<10x16x4xf32>
    %cst = arith.constant 0.000000e+00 : f32
    %18 = vector.broadcast %cst : f32 to vector<10x16x4xf32>
    %19 = arith.maximumf %17, %18 : vector<10x16x4xf32>
    %20 = vector.shape_cast %19 : vector<10x16x4xf32> to vector<160x4xf32>
    %21 = arith.truncf %20 : vector<160x4xf32> to vector<160x4xbf16>
    %c0_15 = arith.constant 0 : index
    %c0_16 = arith.constant 0 : index
    %22 = vector.load %arg7[%c0_15, %c0_16] : memref<4x2xbf16, #tpu.memory_space<vmem>>, vector<4x2xbf16>
    %cst_17 = arith.constant dense<0.000000e+00> : vector<160x2xf32>
    %23 = tpu.matmul %21, %22, %cst_17 {dimension_numbers = #tpu.dot_dimension_numbers<[1], [0], [0], [1], [0, 0, 1, 1], [], []>} : vector<160x4xbf16>, vector<4x2xbf16>, vector<160x2xf32> -> vector<160x2xf32>
    %c0_18 = arith.constant 0 : index
    %c0_19 = arith.constant 0 : index
    %24 = vector.load %arg8[%c0_18, %c0_19] : memref<1x2xf32, #tpu.memory_space<vmem>>, vector<1x2xf32>
    %25 = vector.broadcast %24 : vector<1x2xf32> to vector<160x2xf32>
    %26 = arith.mulf %23, %25 : vector<160x2xf32>
    %c0_20 = arith.constant 0 : index
    %c0_21 = arith.constant 0 : index
    %27 = vector.load %arg9[%c0_20, %c0_21] : memref<1x2xf32, #tpu.memory_space<vmem>>, vector<1x2xf32>
    %28 = vector.broadcast %27 : vector<1x2xf32> to vector<160x2xf32>
    %29 = arith.addf %26, %28 : vector<160x2xf32>
    %cst_22 = arith.constant 0.000000e+00 : f32
    %30 = vector.broadcast %cst_22 : f32 to vector<160x2xf32>
    %31 = arith.maximumf %29, %30 : vector<160x2xf32>
    %32 = vector.shape_cast %31 : vector<160x2xf32> to vector<10x16x2xf32>
    %33 = tpu.iota {dimensions = array<i32: 0>} : vector<10x1x1xi32>
    %c0_i32 = arith.constant 0 : i32
    %34 = vector.broadcast %c0_i32 : i32 to vector<10x1x1xi32>
    %35 = arith.cmpi ne, %33, %34 : vector<10x1x1xi32>
    %c0_i32_23 = arith.constant 0 : i32
    %36 = arith.cmpi sgt, %arg1, %c0_i32_23 : i32
    %37 = vector.broadcast %36 : i1 to vector<10x1x1xi1>
    %38 = arith.ori %35, %37 : vector<10x1x1xi1>
    %c9_i32 = arith.constant 9 : i32
    %39 = vector.broadcast %c9_i32 : i32 to vector<10x1x1xi32>
    %40 = arith.cmpi ne, %33, %39 : vector<10x1x1xi32>
    %c1_i32 = arith.constant 1 : i32
    %41 = arith.cmpi slt, %arg1, %c1_i32 : i32
    %42 = vector.broadcast %41 : i1 to vector<10x1x1xi1>
    %43 = arith.ori %40, %42 : vector<10x1x1xi1>
    %44 = arith.andi %38, %43 : vector<10x1x1xi1>
    %cst_24 = arith.constant 0.000000e+00 : f32
    %45 = vector.shape_cast %44 : vector<10x1x1xi1> to vector<10x1x1xi1>
    %46 = vector.broadcast %45 : vector<10x1x1xi1> to vector<10x16x2xi1>
    %47 = vector.broadcast %cst_24 : f32 to vector<10x16x2xf32>
    %48 = arith.select %46, %32, %47 : vector<10x16x2xi1>, vector<10x16x2xf32>
    %49 = tpu.iota {dimensions = array<i32: 1>} : vector<1x16x1xi32>
    %c0_i32_25 = arith.constant 0 : i32
    %50 = vector.broadcast %c0_i32_25 : i32 to vector<1x16x1xi32>
    %51 = arith.cmpi sgt, %49, %50 : vector<1x16x1xi32>
    %c1_i32_26 = arith.constant 1 : i32
    %52 = tpu.dynamic_rotate %48 by %c1_i32_26 dim 1 : vector<10x16x2xf32>, i32 -> vector<10x16x2xf32>
    %cst_27 = arith.constant 0.000000e+00 : f32
    %53 = vector.shape_cast %51 : vector<1x16x1xi1> to vector<1x16x1xi1>
    %54 = vector.broadcast %53 : vector<1x16x1xi1> to vector<10x16x2xi1>
    %55 = vector.broadcast %cst_27 : f32 to vector<10x16x2xf32>
    %56 = arith.select %54, %52, %55 : vector<10x16x2xi1>, vector<10x16x2xf32>
    %c15_i32 = arith.constant 15 : i32
    %57 = vector.broadcast %c15_i32 : i32 to vector<1x16x1xi32>
    %58 = arith.cmpi slt, %49, %57 : vector<1x16x1xi32>
    %c15_i32_28 = arith.constant 15 : i32
    %59 = tpu.dynamic_rotate %48 by %c15_i32_28 dim 1 : vector<10x16x2xf32>, i32 -> vector<10x16x2xf32>
    %cst_29 = arith.constant 0.000000e+00 : f32
    %60 = vector.shape_cast %58 : vector<1x16x1xi1> to vector<1x16x1xi1>
    %61 = vector.broadcast %60 : vector<1x16x1xi1> to vector<10x16x2xi1>
    %62 = vector.broadcast %cst_29 : f32 to vector<10x16x2xf32>
    %63 = arith.select %61, %59, %62 : vector<10x16x2xi1>, vector<10x16x2xf32>
    %64 = arith.truncf %56 : vector<10x16x2xf32> to vector<10x16x2xbf16>
    %65 = arith.truncf %48 : vector<10x16x2xf32> to vector<10x16x2xbf16>
    %66 = arith.truncf %63 : vector<10x16x2xf32> to vector<10x16x2xbf16>
    %67 = tpu.concatenate %64, %65, %66 in 2 : vector<10x16x2xbf16>, vector<10x16x2xbf16>, vector<10x16x2xbf16> -> vector<10x16x6xbf16>
    %68 = vector.extract_strided_slice %67 {offsets = [0, 0, 0], sizes = [8, 16, 6], strides = [1, 1, 1]} : vector<10x16x6xbf16> to vector<8x16x6xbf16>
    %69 = vector.shape_cast %68 : vector<8x16x6xbf16> to vector<128x6xbf16>
    %c0_30 = arith.constant 0 : index
    %c0_31 = arith.constant 0 : index
    %c0_32 = arith.constant 0 : index
    %70 = vector.load %arg10[%c0_30, %c0_31, %c0_32] : memref<3x6x2xbf16, #tpu.memory_space<vmem>>, vector<1x6x2xbf16>
    %71 = vector.shape_cast %70 : vector<1x6x2xbf16> to vector<6x2xbf16>
    %cst_33 = arith.constant dense<0.000000e+00> : vector<128x2xf32>
    %72 = tpu.matmul %69, %71, %cst_33 {dimension_numbers = #tpu.dot_dimension_numbers<[1], [0], [0], [1], [0, 0, 1, 1], [], []>} : vector<128x6xbf16>, vector<6x2xbf16>, vector<128x2xf32> -> vector<128x2xf32>
    %73 = vector.extract_strided_slice %67 {offsets = [1, 0, 0], sizes = [8, 16, 6], strides = [1, 1, 1]} : vector<10x16x6xbf16> to vector<8x16x6xbf16>
    %74 = vector.shape_cast %73 : vector<8x16x6xbf16> to vector<128x6xbf16>
    %c1 = arith.constant 1 : index
    %c0_34 = arith.constant 0 : index
    %c0_35 = arith.constant 0 : index
    %75 = vector.load %arg10[%c1, %c0_34, %c0_35] : memref<3x6x2xbf16, #tpu.memory_space<vmem>>, vector<1x6x2xbf16>
    %76 = vector.shape_cast %75 : vector<1x6x2xbf16> to vector<6x2xbf16>
    %cst_36 = arith.constant dense<0.000000e+00> : vector<128x2xf32>
    %77 = tpu.matmul %74, %76, %cst_36 {dimension_numbers = #tpu.dot_dimension_numbers<[1], [0], [0], [1], [0, 0, 1, 1], [], []>} : vector<128x6xbf16>, vector<6x2xbf16>, vector<128x2xf32> -> vector<128x2xf32>
    %78 = arith.addf %72, %77 : vector<128x2xf32>
    %79 = vector.extract_strided_slice %67 {offsets = [2, 0, 0], sizes = [8, 16, 6], strides = [1, 1, 1]} : vector<10x16x6xbf16> to vector<8x16x6xbf16>
    %80 = vector.shape_cast %79 : vector<8x16x6xbf16> to vector<128x6xbf16>
    %c2 = arith.constant 2 : index
    %c0_37 = arith.constant 0 : index
    %c0_38 = arith.constant 0 : index
    %81 = vector.load %arg10[%c2, %c0_37, %c0_38] : memref<3x6x2xbf16, #tpu.memory_space<vmem>>, vector<1x6x2xbf16>
    %82 = vector.shape_cast %81 : vector<1x6x2xbf16> to vector<6x2xbf16>
    %cst_39 = arith.constant dense<0.000000e+00> : vector<128x2xf32>
    %83 = tpu.matmul %80, %82, %cst_39 {dimension_numbers = #tpu.dot_dimension_numbers<[1], [0], [0], [1], [0, 0, 1, 1], [], []>} : vector<128x6xbf16>, vector<6x2xbf16>, vector<128x2xf32> -> vector<128x2xf32>
    %84 = arith.addf %78, %83 : vector<128x2xf32>
    %c0_40 = arith.constant 0 : index
    %c0_41 = arith.constant 0 : index
    %85 = vector.load %arg11[%c0_40, %c0_41] : memref<1x2xf32, #tpu.memory_space<vmem>>, vector<1x2xf32>
    %86 = vector.broadcast %85 : vector<1x2xf32> to vector<128x2xf32>
    %87 = arith.mulf %84, %86 : vector<128x2xf32>
    %c0_42 = arith.constant 0 : index
    %c0_43 = arith.constant 0 : index
    %88 = vector.load %arg12[%c0_42, %c0_43] : memref<1x2xf32, #tpu.memory_space<vmem>>, vector<1x2xf32>
    %89 = vector.broadcast %88 : vector<1x2xf32> to vector<128x2xf32>
    %90 = arith.addf %87, %89 : vector<128x2xf32>
    %cst_44 = arith.constant 0.000000e+00 : f32
    %91 = vector.broadcast %cst_44 : f32 to vector<128x2xf32>
    %92 = arith.maximumf %90, %91 : vector<128x2xf32>
    %93 = arith.truncf %92 : vector<128x2xf32> to vector<128x2xbf16>
    %c0_45 = arith.constant 0 : index
    %c0_46 = arith.constant 0 : index
    %94 = vector.load %arg13[%c0_45, %c0_46] : memref<2x4xbf16, #tpu.memory_space<vmem>>, vector<2x4xbf16>
    %cst_47 = arith.constant dense<0.000000e+00> : vector<128x4xf32>
    %95 = tpu.matmul %93, %94, %cst_47 {dimension_numbers = #tpu.dot_dimension_numbers<[1], [0], [0], [1], [0, 0, 1, 1], [], []>} : vector<128x2xbf16>, vector<2x4xbf16>, vector<128x4xf32> -> vector<128x4xf32>
    %c0_48 = arith.constant 0 : index
    %c0_49 = arith.constant 0 : index
    %96 = vector.load %arg14[%c0_48, %c0_49] : memref<1x4xf32, #tpu.memory_space<vmem>>, vector<1x4xf32>
    %97 = vector.broadcast %96 : vector<1x4xf32> to vector<128x4xf32>
    %98 = arith.addf %95, %97 : vector<128x4xf32>
    %99 = vector.shape_cast %98 : vector<128x4xf32> to vector<8x16x4xf32>
    %100 = arith.addf %99, %2 : vector<8x16x4xf32>
    %101 = arith.truncf %100 : vector<8x16x4xf32> to vector<8x16x4xbf16>
    %c0_50 = arith.constant 0 : index
    %c0_51 = arith.constant 0 : index
    %c0_52 = arith.constant 0 : index
    %c0_53 = arith.constant 0 : index
    %102 = vector.load %arg15[%c0_50, %c0_51, %c0_52, %c0_53] : memref<1x8x16x4xbf16, #tpu.memory_space<vmem>>, vector<1x8x16x4xbf16>
    %103 = vector.shape_cast %102 : vector<1x8x16x4xbf16> to vector<8x16x4xbf16>
    %104 = vector.shape_cast %101 : vector<8x16x4xbf16> to vector<1x8x16x4xbf16>
    tpu.vector_store %arg15[%c0_50, %c0_51, %c0_52, %c0_53], %104 {strides = array<i32>} : memref<1x8x16x4xbf16, #tpu.memory_space<vmem>>, vector<1x8x16x4xbf16>,
    return
  }
  func.func @transform_0(%arg0: i32, %arg1: i32) -> (i32, i32, i32, i32) {
    %c8_i32 = arith.constant 8 : i32
    %0 = arith.muli %arg1, %c8_i32 : i32
    %c1_i32 = arith.constant 1 : i32
    %1 = arith.subi %0, %c1_i32 : i32
    %c0_i32 = arith.constant 0 : i32
    %2 = arith.maxsi %1, %c0_i32 : i32
    %c0_i32_0 = arith.constant 0 : i32
    %c0_i32_1 = arith.constant 0 : i32
    %c0_i32_2 = arith.constant 0 : i32
    return %arg0, %2, %c0_i32_0, %c0_i32_1 : i32, i32, i32, i32
  }
  func.func @transform_1(%arg0: i32, %arg1: i32) -> (i32, i32, i32, i32) {
    %c0_i32 = arith.constant 0 : i32
    %c0_i32_0 = arith.constant 0 : i32
    %c0_i32_1 = arith.constant 0 : i32
    return %arg0, %arg1, %c0_i32, %c0_i32_0 : i32, i32, i32, i32
  }
  func.func @transform_2(%arg0: i32, %arg1: i32) -> (i32, i32, i32, i32) {
    %c8_i32 = arith.constant 8 : i32
    %0 = arith.muli %arg1, %c8_i32 : i32
    %c8_i32_0 = arith.constant 8 : i32
    %1 = arith.addi %0, %c8_i32_0 : i32
    %c15_i32 = arith.constant 15 : i32
    %2 = arith.minsi %1, %c15_i32 : i32
    %c0_i32 = arith.constant 0 : i32
    %c0_i32_1 = arith.constant 0 : i32
    %c0_i32_2 = arith.constant 0 : i32
    return %arg0, %2, %c0_i32, %c0_i32_1 : i32, i32, i32, i32
  }
  func.func @transform_3(%arg0: i32, %arg1: i32) -> (i32, i32) {
    %c0_i32 = arith.constant 0 : i32
    %c0_i32_0 = arith.constant 0 : i32
    %c0_i32_1 = arith.constant 0 : i32
    return %c0_i32, %c0_i32_0 : i32, i32
  }
  func.func @transform_4(%arg0: i32, %arg1: i32) -> (i32, i32) {
    %c0_i32 = arith.constant 0 : i32
    %c0_i32_0 = arith.constant 0 : i32
    %c0_i32_1 = arith.constant 0 : i32
    return %c0_i32, %c0_i32_0 : i32, i32
  }
  func.func @transform_5(%arg0: i32, %arg1: i32) -> (i32, i32) {
    %c0_i32 = arith.constant 0 : i32
    %c0_i32_0 = arith.constant 0 : i32
    %c0_i32_1 = arith.constant 0 : i32
    return %c0_i32, %c0_i32_0 : i32, i32
  }
  func.func @transform_6(%arg0: i32, %arg1: i32) -> (i32, i32) {
    %c0_i32 = arith.constant 0 : i32
    %c0_i32_0 = arith.constant 0 : i32
    %c0_i32_1 = arith.constant 0 : i32
    return %c0_i32, %c0_i32_0 : i32, i32
  }
  func.func @transform_7(%arg0: i32, %arg1: i32) -> (i32, i32) {
    %c0_i32 = arith.constant 0 : i32
    %c0_i32_0 = arith.constant 0 : i32
    %c0_i32_1 = arith.constant 0 : i32
    return %c0_i32, %c0_i32_0 : i32, i32
  }
  func.func @transform_8(%arg0: i32, %arg1: i32) -> (i32, i32, i32) {
    %c0_i32 = arith.constant 0 : i32
    %c0_i32_0 = arith.constant 0 : i32
    %c0_i32_1 = arith.constant 0 : i32
    %c0_i32_2 = arith.constant 0 : i32
    return %c0_i32, %c0_i32_0, %c0_i32_1 : i32, i32, i32
  }
  func.func @transform_9(%arg0: i32, %arg1: i32) -> (i32, i32) {
    %c0_i32 = arith.constant 0 : i32
    %c0_i32_0 = arith.constant 0 : i32
    %c0_i32_1 = arith.constant 0 : i32
    return %c0_i32, %c0_i32_0 : i32, i32
  }
  func.func @transform_10(%arg0: i32, %arg1: i32) -> (i32, i32) {
    %c0_i32 = arith.constant 0 : i32
    %c0_i32_0 = arith.constant 0 : i32
    %c0_i32_1 = arith.constant 0 : i32
    return %c0_i32, %c0_i32_0 : i32, i32
  }
  func.func @transform_11(%arg0: i32, %arg1: i32) -> (i32, i32) {
    %c0_i32 = arith.constant 0 : i32
    %c0_i32_0 = arith.constant 0 : i32
    %c0_i32_1 = arith.constant 0 : i32
    return %c0_i32, %c0_i32_0 : i32, i32
  }
  func.func @transform_12(%arg0: i32, %arg1: i32) -> (i32, i32) {
    %c0_i32 = arith.constant 0 : i32
    %c0_i32_0 = arith.constant 0 : i32
    %c0_i32_1 = arith.constant 0 : i32
    return %c0_i32, %c0_i32_0 : i32, i32
  }
  func.func @transform_13(%arg0: i32, %arg1: i32) -> (i32, i32, i32, i32) {
    %c0_i32 = arith.constant 0 : i32
    %c0_i32_0 = arith.constant 0 : i32
    %c0_i32_1 = arith.constant 0 : i32
    return %arg0, %arg1, %c0_i32, %c0_i32_0 : i32, i32, i32, i32
  }
}

</mosaic_0001>

<llo_original>
// kernel: tpu_custom_call.1
$region0: #{tpu_custom_call.1}
  #allocation0 [shape = 'u32[]', space=smem, size = 0x4, offset = 0x4, fixed_abs, tag = 'smem constant byte address 0x4 - core index']
  #allocation1 [shape = 'u32[144,128]{1,0:T(1,128)}', space=vmem, size = 0x12000, scoped, tag = 'internal scratch']
  %s0 = inlined_call_operand.vmem [shape: bf16[2,16,16,4], index: 0, kind: input, shape index: {}]
  %s1 = inlined_call_operand.vmem [shape: bf16[2,16,16,4], index: 1, kind: input, shape index: {}]
  %s2 = inlined_call_operand.vmem [shape: bf16[2,16,16,4], index: 2, kind: input, shape index: {}]
  %s3 = inlined_call_operand.vmem [shape: f32[1,4], index: 3, kind: input, shape index: {}]
  %s4 = inlined_call_operand.vmem [shape: f32[1,4], index: 4, kind: input, shape index: {}]
  %s5 = inlined_call_operand.vmem [shape: bf16[4,2], index: 5, kind: input, shape index: {}]
  %s6 = inlined_call_operand.vmem [shape: f32[1,2], index: 6, kind: input, shape index: {}]
  %s7 = inlined_call_operand.vmem [shape: f32[1,2], index: 7, kind: input, shape index: {}]
  %s8 = inlined_call_operand.vmem [shape: bf16[3,6,2], index: 8, kind: input, shape index: {}]
  %s9 = inlined_call_operand.vmem [shape: f32[1,2], index: 9, kind: input, shape index: {}]
  %s10 = inlined_call_operand.vmem [shape: f32[1,2], index: 10, kind: input, shape index: {}]
  %s11 = inlined_call_operand.vmem [shape: bf16[2,4], index: 11, kind: input, shape index: {}]
  %s12 = inlined_call_operand.vmem [shape: f32[1,4], index: 12, kind: input, shape index: {}]
  %s13 = inlined_call_operand.vmem [shape: bf16[2,16,16,4], index: 13, kind: output, shape index: {}]
  %s14 = sld [smem:[#allocation0]]
  $region85: #{tpu_custom_call.1} parent=0
    _
  %s16 = ssub.s32 1, %s14
  %s17 = scalar_select 0, %s16, %s14
  loop: start=0, step=1, limit=6
  $region2: #{tpu_custom_call.1} parent=0 // loop_pre_header
    _
  $region3: #{tpu_custom_call.1} parent=0 // loop_header
    %s19 = sphi 0, %s23
    %p20 = scmp.ge.s32.totalorder %s19, 6
    %s26 = sphi 0, %s38
    %s27 = sphi 0, %s34
    %s28 = sphi 0, %s26
    %s29 = sphi 0, %s27
    %s30 = sphi 0, %s28
    %s31 = sphi 0, %s29
    %s51 = sphi 0, %s53
    %s54 = sphi 0, %s51
    %s55 = sphi 0, %s54
    %s71 = sphi 0, %s55
    %s79 = sphi 0, %s81
    %s82 = sphi 0, %s79
    %s83 = sphi 0, %s82
    %s99 = sphi 0, %s83
    %s115 = sphi 0, %s117
    %s118 = sphi 0, %s115
    %s119 = sphi 0, %s118
    %s135 = sphi 0, %s119
    %s139 = sphi 0, %s139
    %s141 = sphi 0, %s139
    %s142 = sphi 0, %s141
    %s156 = sphi 0, %s142
    %s160 = sphi 0, %s160
    %s162 = sphi 0, %s160
    %s163 = sphi 0, %s162
    %s177 = sphi 0, %s163
    %s181 = sphi 0, %s181
    %s183 = sphi 0, %s181
    %s184 = sphi 0, %s183
    %s198 = sphi 0, %s184
    %s202 = sphi 0, %s202
    %s204 = sphi 0, %s202
    %s205 = sphi 0, %s204
    %s219 = sphi 0, %s205
    %s223 = sphi 0, %s223
    %s225 = sphi 0, %s223
    %s226 = sphi 0, %s225
    %s240 = sphi 0, %s226
    %s244 = sphi 0, %s244
    %s246 = sphi 0, %s244
    %s247 = sphi 0, %s246
    %s261 = sphi 0, %s247
    %s265 = sphi 0, %s265
    %s267 = sphi 0, %s265
    %s268 = sphi 0, %s267
    %s282 = sphi 0, %s268
    %s286 = sphi 0, %s286
    %s288 = sphi 0, %s286
    %s289 = sphi 0, %s288
    %s303 = sphi 0, %s289
    %s307 = sphi 0, %s307
    %s309 = sphi 0, %s307
    %s310 = sphi 0, %s309
    %s324 = sphi 0, %s310
    %s328 = sphi 0, %s328
    %s330 = sphi 0, %s328
    %s331 = sphi 0, %s330
    %s345 = sphi 0, %s331
    %s353 = sphi 0, %s355
    %s356 = sphi 0, %s353
    %s357 = sphi 0, %s356
    %s373 = sphi 0, %s357
  $region4: #{tpu_custom_call.1} parent=0 // loop_header_branch
    %22 = sbr.rel (%p20) target = $region8
  $region5: #{tpu_custom_call.1} parent=0 // loop_body
    %s24 = ssub.s32 %s19, 1
    %s25 = ssub.s32 %s19, 2
    %s32 = sadd.s32 1, %s27
    %p33 = scmp.ge.s32.totalorder %s32, 2
    %s34 = scalar_select %p33, 0, %s32
    %s35 = sadd.s32 1, %s26
    %s36 = scalar_select %p33, %s35, %s26
    %p37 = scmp.ge.s32.totalorder %s36, 2
    %s38 = scalar_select %p37, 0, %s36
    %s39 = smul.u32 %s27, 8
    %s40 = ssub.s32 %s39, 1
    %p41 = scmp.gt.s32.totalorder %s40, 0
    %s42 = scalar_select %p41, %s40, 0
    %s43 = smul.u32 %s34, 8
    %s44 = ssub.s32 %s43, 1
    %p45 = scmp.gt.s32.totalorder %s44, 0
    %s46 = scalar_select %p45, %s44, 0
    %s47 = ssub.s32 %s26, %s38
    %s48 = ssub.s32 %s42, %s46
    %s49 = sor.u32 %s47, %s48
    %p50 = scmp.eq.s32.totalorder %s49, 0
    %s52 = sadd.s32 %s51, 1
    %s53 = scalar_select %p50, %s51, %s52
    %p56 = pneg %p50
    %p57 = scmp.eq.s32.totalorder %s19, 3
    %p58 = por %p56, %p57
    %p59 = scmp.ne.s32.totalorder %s51, %s54
    %p60 = scmp.eq.s32.totalorder %s19, 0
    %p61 = por %p59, %p60
    %p62 = scmp.ne.s32.totalorder %s51, %s54
    %p63 = scmp.eq.s32.totalorder %s24, 3
    %p64 = por %p62, %p63
    %p65 = scmp.ne.s32.totalorder %s54, %s55
    %p66 = scmp.eq.s32.totalorder %s24, 0
    %p67 = por %p65, %p66
    %p68 = scmp.ne.s32.totalorder %s54, %s55
    %p69 = scmp.eq.s32.totalorder %s25, 3
    %p70 = por %p68, %p69
    %p72 = scmp.ne.s32.totalorder %s55, %s71
    %p73 = scmp.eq.s32.totalorder %s25, 0
    %p74 = por %p72, %p73
    %s75 = ssub.s32 %s26, %s38
    %s76 = ssub.s32 %s27, %s34
    %s77 = sor.u32 %s75, %s76
    %p78 = scmp.eq.s32.totalorder %s77, 0
    %s80 = sadd.s32 %s79, 1
    %s81 = scalar_select %p78, %s79, %s80
    %p84 = pneg %p78
    %p85 = scmp.eq.s32.totalorder %s19, 3
    %p86 = por %p84, %p85
    %p87 = scmp.ne.s32.totalorder %s79, %s82
    %p88 = scmp.eq.s32.totalorder %s19, 0
    %p89 = por %p87, %p88
    %p90 = scmp.ne.s32.totalorder %s79, %s82
    %p91 = scmp.eq.s32.totalorder %s24, 3
    %p92 = por %p90, %p91
    %p93 = scmp.ne.s32.totalorder %s82, %s83
    %p94 = scmp.eq.s32.totalorder %s24, 0
    %p95 = por %p93, %p94
    %p96 = scmp.ne.s32.totalorder %s82, %s83
    %p97 = scmp.eq.s32.totalorder %s25, 3
    %p98 = por %p96, %p97
    %p100 = scmp.ne.s32.totalorder %s83, %s99
    %p101 = scmp.eq.s32.totalorder %s25, 0
    %p102 = por %p100, %p101
    %s103 = smul.u32 %s27, 8
    %s104 = sadd.s32 %s103, 8
    %p105 = scmp.lt.s32.totalorder %s104, 15
    %s106 = scalar_select %p105, %s104, 15
    %s107 = smul.u32 %s34, 8
    %s108 = sadd.s32 %s107, 8
    %p109 = scmp.lt.s32.totalorder %s108, 15
    %s110 = scalar_select %p109, %s108, 15
    %s111 = ssub.s32 %s26, %s38
    %s112 = ssub.s32 %s106, %s110
    %s113 = sor.u32 %s111, %s112
    %p114 = scmp.eq.s32.totalorder %s113, 0
    %s116 = sadd.s32 %s115, 1
    %s117 = scalar_select %p114, %s115, %s116
    %p120 = pneg %p114
    %p121 = scmp.eq.s32.totalorder %s19, 3
    %p122 = por %p120, %p121
    %p123 = scmp.ne.s32.totalorder %s115, %s118
    %p124 = scmp.eq.s32.totalorder %s19, 0
    %p125 = por %p123, %p124
    %p126 = scmp.ne.s32.totalorder %s115, %s118
    %p127 = scmp.eq.s32.totalorder %s24, 3
    %p128 = por %p126, %p127
    %p129 = scmp.ne.s32.totalorder %s118, %s119
    %p130 = scmp.eq.s32.totalorder %s24, 0
    %p131 = por %p129, %p130
    %p132 = scmp.ne.s32.totalorder %s118, %s119
    %p133 = scmp.eq.s32.totalorder %s25, 3
    %p134 = por %p132, %p133
    %p136 = scmp.ne.s32.totalorder %s119, %s135
    %p137 = scmp.eq.s32.totalorder %s25, 0
    %p138 = por %p136, %p137
    %s140 = sadd.s32 %s139, 1
    %p143 = scmp.eq.s32.totalorder %s19, 3
    %p144 = scmp.ne.s32.totalorder %s139, %s141
    %p145 = scmp.eq.s32.totalorder %s19, 0
    %p146 = por %p144, %p145
    %p147 = scmp.ne.s32.totalorder %s139, %s141
    %p148 = scmp.eq.s32.totalorder %s24, 3
    %p149 = por %p147, %p148
    %p150 = scmp.ne.s32.totalorder %s141, %s142
    %p151 = scmp.eq.s32.totalorder %s24, 0
    %p152 = por %p150, %p151
    %p153 = scmp.ne.s32.totalorder %s141, %s142
    %p154 = scmp.eq.s32.totalorder %s25, 3
    %p155 = por %p153, %p154
    %p157 = scmp.ne.s32.totalorder %s142, %s156
    %p158 = scmp.eq.s32.totalorder %s25, 0
    %p159 = por %p157, %p158
    %s161 = sadd.s32 %s160, 1
    %p164 = scmp.eq.s32.totalorder %s19, 3
    %p165 = scmp.ne.s32.totalorder %s160, %s162
    %p166 = scmp.eq.s32.totalorder %s19, 0
    %p167 = por %p165, %p166
    %p168 = scmp.ne.s32.totalorder %s160, %s162
    %p169 = scmp.eq.s32.totalorder %s24, 3
    %p170 = por %p168, %p169
    %p171 = scmp.ne.s32.totalorder %s162, %s163
    %p172 = scmp.eq.s32.totalorder %s24, 0
    %p173 = por %p171, %p172
    %p174 = scmp.ne.s32.totalorder %s162, %s163
    %p175 = scmp.eq.s32.totalorder %s25, 3
    %p176 = por %p174, %p175
    %p178 = scmp.ne.s32.totalorder %s163, %s177
    %p179 = scmp.eq.s32.totalorder %s25, 0
    %p180 = por %p178, %p179
    %s182 = sadd.s32 %s181, 1
    %p185 = scmp.eq.s32.totalorder %s19, 3
    %p186 = scmp.ne.s32.totalorder %s181, %s183
    %p187 = scmp.eq.s32.totalorder %s19, 0
    %p188 = por %p186, %p187
    %p189 = scmp.ne.s32.totalorder %s181, %s183
    %p190 = scmp.eq.s32.totalorder %s24, 3
    %p191 = por %p189, %p190
    %p192 = scmp.ne.s32.totalorder %s183, %s184
    %p193 = scmp.eq.s32.totalorder %s24, 0
    %p194 = por %p192, %p193
    %p195 = scmp.ne.s32.totalorder %s183, %s184
    %p196 = scmp.eq.s32.totalorder %s25, 3
    %p197 = por %p195, %p196
    %p199 = scmp.ne.s32.totalorder %s184, %s198
    %p200 = scmp.eq.s32.totalorder %s25, 0
    %p201 = por %p199, %p200
    %s203 = sadd.s32 %s202, 1
    %p206 = scmp.eq.s32.totalorder %s19, 3
    %p207 = scmp.ne.s32.totalorder %s202, %s204
    %p208 = scmp.eq.s32.totalorder %s19, 0
    %p209 = por %p207, %p208
    %p210 = scmp.ne.s32.totalorder %s202, %s204
    %p211 = scmp.eq.s32.totalorder %s24, 3
    %p212 = por %p210, %p211
    %p213 = scmp.ne.s32.totalorder %s204, %s205
    %p214 = scmp.eq.s32.totalorder %s24, 0
    %p215 = por %p213, %p214
    %p216 = scmp.ne.s32.totalorder %s204, %s205
    %p217 = scmp.eq.s32.totalorder %s25, 3
    %p218 = por %p216, %p217
    %p220 = scmp.ne.s32.totalorder %s205, %s219
    %p221 = scmp.eq.s32.totalorder %s25, 0
    %p222 = por %p220, %p221
    %s224 = sadd.s32 %s223, 1
    %p227 = scmp.eq.s32.totalorder %s19, 3
    %p228 = scmp.ne.s32.totalorder %s223, %s225
    %p229 = scmp.eq.s32.totalorder %s19, 0
    %p230 = por %p228, %p229
    %p231 = scmp.ne.s32.totalorder %s223, %s225
    %p232 = scmp.eq.s32.totalorder %s24, 3
    %p233 = por %p231, %p232
    %p234 = scmp.ne.s32.totalorder %s225, %s226
    %p235 = scmp.eq.s32.totalorder %s24, 0
    %p236 = por %p234, %p235
    %p237 = scmp.ne.s32.totalorder %s225, %s226
    %p238 = scmp.eq.s32.totalorder %s25, 3
    %p239 = por %p237, %p238
    %p241 = scmp.ne.s32.totalorder %s226, %s240
    %p242 = scmp.eq.s32.totalorder %s25, 0
    %p243 = por %p241, %p242
    %s245 = sadd.s32 %s244, 1
    %p248 = scmp.eq.s32.totalorder %s19, 3
    %p249 = scmp.ne.s32.totalorder %s244, %s246
    %p250 = scmp.eq.s32.totalorder %s19, 0
    %p251 = por %p249, %p250
    %p252 = scmp.ne.s32.totalorder %s244, %s246
    %p253 = scmp.eq.s32.totalorder %s24, 3
    %p254 = por %p252, %p253
    %p255 = scmp.ne.s32.totalorder %s246, %s247
    %p256 = scmp.eq.s32.totalorder %s24, 0
    %p257 = por %p255, %p256
    %p258 = scmp.ne.s32.totalorder %s246, %s247
    %p259 = scmp.eq.s32.totalorder %s25, 3
    %p260 = por %p258, %p259
    %p262 = scmp.ne.s32.totalorder %s247, %s261
    %p263 = scmp.eq.s32.totalorder %s25, 0
    %p264 = por %p262, %p263
    %s266 = sadd.s32 %s265, 1
    %p269 = scmp.eq.s32.totalorder %s19, 3
    %p270 = scmp.ne.s32.totalorder %s265, %s267
    %p271 = scmp.eq.s32.totalorder %s19, 0
    %p272 = por %p270, %p271
    %p273 = scmp.ne.s32.totalorder %s265, %s267
    %p274 = scmp.eq.s32.totalorder %s24, 3
    %p275 = por %p273, %p274
    %p276 = scmp.ne.s32.totalorder %s267, %s268
    %p277 = scmp.eq.s32.totalorder %s24, 0
    %p278 = por %p276, %p277
    %p279 = scmp.ne.s32.totalorder %s267, %s268
    %p280 = scmp.eq.s32.totalorder %s25, 3
    %p281 = por %p279, %p280
    %p283 = scmp.ne.s32.totalorder %s268, %s282
    %p284 = scmp.eq.s32.totalorder %s25, 0
    %p285 = por %p283, %p284
    %s287 = sadd.s32 %s286, 1
    %p290 = scmp.eq.s32.totalorder %s19, 3
    %p291 = scmp.ne.s32.totalorder %s286, %s288
    %p292 = scmp.eq.s32.totalorder %s19, 0
    %p293 = por %p291, %p292
    %p294 = scmp.ne.s32.totalorder %s286, %s288
    %p295 = scmp.eq.s32.totalorder %s24, 3
    %p296 = por %p294, %p295
    %p297 = scmp.ne.s32.totalorder %s288, %s289
    %p298 = scmp.eq.s32.totalorder %s24, 0
    %p299 = por %p297, %p298
    %p300 = scmp.ne.s32.totalorder %s288, %s289
    %p301 = scmp.eq.s32.totalorder %s25, 3
    %p302 = por %p300, %p301
    %p304 = scmp.ne.s32.totalorder %s289, %s303
    %p305 = scmp.eq.s32.totalorder %s25, 0
    %p306 = por %p304, %p305
    %s308 = sadd.s32 %s307, 1
    %p311 = scmp.eq.s32.totalorder %s19, 3
    %p312 = scmp.ne.s32.totalorder %s307, %s309
    %p313 = scmp.eq.s32.totalorder %s19, 0
    %p314 = por %p312, %p313
    %p315 = scmp.ne.s32.totalorder %s307, %s309
    %p316 = scmp.eq.s32.totalorder %s24, 3
    %p317 = por %p315, %p316
    %p318 = scmp.ne.s32.totalorder %s309, %s310
    %p319 = scmp.eq.s32.totalorder %s24, 0
    %p320 = por %p318, %p319
    %p321 = scmp.ne.s32.totalorder %s309, %s310
    %p322 = scmp.eq.s32.totalorder %s25, 3
    %p323 = por %p321, %p322
    %p325 = scmp.ne.s32.totalorder %s310, %s324
    %p326 = scmp.eq.s32.totalorder %s25, 0
    %p327 = por %p325, %p326
    %s329 = sadd.s32 %s328, 1
    %p332 = scmp.eq.s32.totalorder %s19, 3
    %p333 = scmp.ne.s32.totalorder %s328, %s330
    %p334 = scmp.eq.s32.totalorder %s19, 0
    %p335 = por %p333, %p334
    %p336 = scmp.ne.s32.totalorder %s328, %s330
    %p337 = scmp.eq.s32.totalorder %s24, 3
    %p338 = por %p336, %p337
    %p339 = scmp.ne.s32.totalorder %s330, %s331
    %p340 = scmp.eq.s32.totalorder %s24, 0
    %p341 = por %p339, %p340
    %p342 = scmp.ne.s32.totalorder %s330, %s331
    %p343 = scmp.eq.s32.totalorder %s25, 3
    %p344 = por %p342, %p343
    %p346 = scmp.ne.s32.totalorder %s331, %s345
    %p347 = scmp.eq.s32.totalorder %s25, 0
    %p348 = por %p346, %p347
    %s349 = ssub.s32 %s26, %s38
    %s350 = ssub.s32 %s27, %s34
    %s351 = sor.u32 %s349, %s350
    %p352 = scmp.eq.s32.totalorder %s351, 0
    %s354 = sadd.s32 %s353, 1
    %s355 = scalar_select %p352, %s353, %s354
    %p358 = pneg %p352
    %p359 = scmp.eq.s32.totalorder %s19, 3
    %p360 = por %p358, %p359
    %p361 = scmp.ne.s32.totalorder %s353, %s356
    %p362 = scmp.eq.s32.totalorder %s19, 0
    %p363 = por %p361, %p362
    %p364 = scmp.ne.s32.totalorder %s353, %s356
    %p365 = scmp.eq.s32.totalorder %s24, 3
    %p366 = por %p364, %p365
    %p367 = scmp.ne.s32.totalorder %s356, %s357
    %p368 = scmp.eq.s32.totalorder %s24, 0
    %p369 = por %p367, %p368
    %p370 = scmp.ne.s32.totalorder %s356, %s357
    %p371 = scmp.eq.s32.totalorder %s25, 3
    %p372 = por %p370, %p371
    %p374 = scmp.ne.s32.totalorder %s357, %s373
    %p375 = scmp.eq.s32.totalorder %s25, 0
    %p376 = por %p374, %p375
    %p377 = scmp.le.s32.totalorder 1, %s19
    %p378 = scmp.lt.s32.totalorder %s19, 5
    %p379 = pnand %p377, %p378
    %p380 = pneg %p379
    // Predicated region
    $region9: #{tpu_custom_call.1} parent=5 // pred_check
      _
    $region10: #{tpu_custom_call.1} parent=5 // pred_check_branch
      %382 = sbr.rel (%p379) target = $region12
    $region11: #{tpu_custom_call.1} parent=5 // pred_region
      %s383 = ssub.s32 %s19, 1
      // Predicated region
      $region13: #{tpu_custom_call.1} parent=11 // pred_check
        %p384 = pneg %p152
      $region14: #{tpu_custom_call.1} parent=11 // pred_check_branch
        %386 = sbr.rel (%p384) target = $region16
      $region15: #{tpu_custom_call.1} parent=11 // pred_region
        _
      $region16: #{tpu_custom_call.1} parent=11 // pred_fallthru
        _
      // Predicated region
      $region17: #{tpu_custom_call.1} parent=11 // pred_check
        %p387 = pneg %p173
      $region18: #{tpu_custom_call.1} parent=11 // pred_check_branch
        %389 = sbr.rel (%p387) target = $region20
      $region19: #{tpu_custom_call.1} parent=11 // pred_region
        _
      $region20: #{tpu_custom_call.1} parent=11 // pred_fallthru
        _
      // Predicated region
      $region21: #{tpu_custom_call.1} parent=11 // pred_check
        %p390 = pneg %p194
      $region22: #{tpu_custom_call.1} parent=11 // pred_check_branch
        %392 = sbr.rel (%p390) target = $region24
      $region23: #{tpu_custom_call.1} parent=11 // pred_region
        _
      $region24: #{tpu_custom_call.1} parent=11 // pred_fallthru
        _
      // Predicated region
      $region25: #{tpu_custom_call.1} parent=11 // pred_check
        %p393 = pneg %p215
      $region26: #{tpu_custom_call.1} parent=11 // pred_check_branch
        %395 = sbr.rel (%p393) target = $region28
      $region27: #{tpu_custom_call.1} parent=11 // pred_region
        _
      $region28: #{tpu_custom_call.1} parent=11 // pred_fallthru
        _
      // Predicated region
      $region29: #{tpu_custom_call.1} parent=11 // pred_check
        %p396 = pneg %p236
      $region30: #{tpu_custom_call.1} parent=11 // pred_check_branch
        %398 = sbr.rel (%p396) target = $region32
      $region31: #{tpu_custom_call.1} parent=11 // pred_region
        _
      $region32: #{tpu_custom_call.1} parent=11 // pred_fallthru
        _
      // Predicated region
      $region33: #{tpu_custom_call.1} parent=11 // pred_check
        %p399 = pneg %p257
      $region34: #{tpu_custom_call.1} parent=11 // pred_check_branch
        %401 = sbr.rel (%p399) target = $region36
      $region35: #{tpu_custom_call.1} parent=11 // pred_region
        _
      $region36: #{tpu_custom_call.1} parent=11 // pred_fallthru
        _
      // Predicated region
      $region37: #{tpu_custom_call.1} parent=11 // pred_check
        %p402 = pneg %p278
      $region38: #{tpu_custom_call.1} parent=11 // pred_check_branch
        %404 = sbr.rel (%p402) target = $region40
      $region39: #{tpu_custom_call.1} parent=11 // pred_region
        _
      $region40: #{tpu_custom_call.1} parent=11 // pred_fallthru
        _
      // Predicated region
      $region41: #{tpu_custom_call.1} parent=11 // pred_check
        %p405 = pneg %p299
      $region42: #{tpu_custom_call.1} parent=11 // pred_check_branch
        %407 = sbr.rel (%p405) target = $region44
      $region43: #{tpu_custom_call.1} parent=11 // pred_region
        _
      $region44: #{tpu_custom_call.1} parent=11 // pred_fallthru
        _
      // Predicated region
      $region45: #{tpu_custom_call.1} parent=11 // pred_check
        %p408 = pneg %p320
      $region46: #{tpu_custom_call.1} parent=11 // pred_check_branch
        %410 = sbr.rel (%p408) target = $region48
      $region47: #{tpu_custom_call.1} parent=11 // pred_region
        _
      $region48: #{tpu_custom_call.1} parent=11 // pred_fallthru
        _
      // Predicated region
      $region49: #{tpu_custom_call.1} parent=11 // pred_check
        %p411 = pneg %p341
      $region50: #{tpu_custom_call.1} parent=11 // pred_check_branch
        %413 = sbr.rel (%p411) target = $region52
      $region51: #{tpu_custom_call.1} parent=11 // pred_region
        _
      $region52: #{tpu_custom_call.1} parent=11 // pred_fallthru
        _
    $region12: #{tpu_custom_call.1} parent=5 // pred_fallthru
      _
    %p414 = scmp.lt.s32.totalorder %s19, 4
    // Predicated region
    $region53: #{tpu_custom_call.1} parent=5 // pred_check
      %p415 = pneg %p414
    $region54: #{tpu_custom_call.1} parent=5 // pred_check_branch
      %417 = sbr.rel (%p415) target = $region56
    $region55: #{tpu_custom_call.1} parent=5 // pred_region
      // Predicated region
      $region57: #{tpu_custom_call.1} parent=55 // pred_check
        %p418 = pneg %p61
      $region58: #{tpu_custom_call.1} parent=55 // pred_check_branch
        %420 = sbr.rel (%p418) target = $region60
      $region59: #{tpu_custom_call.1} parent=55 // pred_region
        %s421 = smul.u32 %s27, 8
        %s422 = ssub.s32 %s421, 1
        %p423 = scmp.gt.s32.totalorder %s422, 0
        %s424 = scalar_select %p423, %s422, 0
        %p425 = scmp.lt.s32.totalorder %s26, 1
        %s426 = scalar_select %p425, %s26, 1
        %p427 = scmp.lt.s32.totalorder %s424, 15
        %s428 = scalar_select %p427, %s424, 15
        %s429 = smul.addr %s428, 2
        %s430 = smul.addr %s426, 32
        %s431 = sadd.s32 %s429, %s430
        %s432 = smul.addr %s431, 4
        %s433 = scalar_lea.vmem %s0, %s432
        %s434 = smul.u32 %s27, 8
        %s435 = ssub.s32 %s434, 1
        %p436 = scmp.gt.s32.totalorder %s435, 0
        %s437 = scalar_select %p436, %s435, 0
      $region60: #{tpu_custom_call.1} parent=55 // pred_fallthru
        _
      // Predicated region
      $region61: #{tpu_custom_call.1} parent=55 // pred_check
        %p438 = pneg %p89
      $region62: #{tpu_custom_call.1} parent=55 // pred_check_branch
        %440 = sbr.rel (%p438) target = $region64
      $region63: #{tpu_custom_call.1} parent=55 // pred_region
        %s441 = smul.u32 8, %s27
        %p442 = scmp.lt.s32.totalorder %s26, 1
        %s443 = scalar_select %p442, %s26, 1
        %p444 = scmp.lt.s32.totalorder %s441, 15
        %s445 = scalar_select %p444, %s441, 15
        %s446 = smul.addr %s445, 2
        %s447 = smul.addr %s443, 32
        %s448 = sadd.s32 %s446, %s447
        %s449 = smul.addr %s448, 4
        %s450 = scalar_lea.vmem %s1, %s449
        %s451 = smul.u32 8, %s27
      $region64: #{tpu_custom_call.1} parent=55 // pred_fallthru
        _
      // Predicated region
      $region65: #{tpu_custom_call.1} parent=55 // pred_check
        %p452 = pneg %p125
      $region66: #{tpu_custom_call.1} parent=55 // pred_check_branch
        %454 = sbr.rel (%p452) target = $region68
      $region67: #{tpu_custom_call.1} parent=55 // pred_region
        %s455 = smul.u32 %s27, 8
        %s456 = sadd.s32 %s455, 8
        %p457 = scmp.lt.s32.totalorder %s456, 15
        %s458 = scalar_select %p457, %s456, 15
        %p459 = scmp.lt.s32.totalorder %s26, 1
        %s460 = scalar_select %p459, %s26, 1
        %p461 = scmp.lt.s32.totalorder %s458, 15
        %s462 = scalar_select %p461, %s458, 15
        %s463 = smul.addr %s462, 2
        %s464 = smul.addr %s460, 32
        %s465 = sadd.s32 %s463, %s464
        %s466 = smul.addr %s465, 4
        %s467 = scalar_lea.vmem %s2, %s466
        %s468 = smul.u32 %s27, 8
        %s469 = sadd.s32 %s468, 8
        %p470 = scmp.lt.s32.totalorder %s469, 15
        %s471 = scalar_select %p470, %s469, 15
      $region68: #{tpu_custom_call.1} parent=55 // pred_fallthru
        _
    $region56: #{tpu_custom_call.1} parent=5 // pred_fallthru
      _
    %p472 = scmp.le.s32.totalorder 1, %s19
    %p473 = scmp.lt.s32.totalorder %s19, 5
    %p474 = pnand %p472, %p473
    %p475 = pneg %p474
    // Predicated region
    $region69: #{tpu_custom_call.1} parent=5 // pred_check
      _
    $region70: #{tpu_custom_call.1} parent=5 // pred_check_branch
      %477 = sbr.rel (%p474) target = $region72
    $region71: #{tpu_custom_call.1} parent=5 // pred_region
      %s478 = ssub.s32 %s19, 1
      %s479 = smul.u32 %s29, 8
      %s480 = ssub.s32 %s479, 1
      %p481 = scmp.gt.s32.totalorder %s480, 0
      %s482 = scalar_select %p481, %s480, 0
      %p483 = scmp.lt.s32.totalorder %s28, 1
      %s484 = scalar_select %p483, %s28, 1
      %p485 = scmp.lt.s32.totalorder %s482, 15
      %s486 = scalar_select %p485, %s482, 15
      %s487 = smul.addr %s486, 2
      %s488 = smul.addr %s484, 32
      %s489 = sadd.s32 %s487, %s488
      %s490 = smul.addr %s489, 4
      %s491 = scalar_lea.vmem %s0, %s490
      %p492 = pneg %p67
      %p493 = pneg %p64
      %s494 = smul.u32 8, %s29
      %p495 = scmp.lt.s32.totalorder %s28, 1
      %s496 = scalar_select %p495, %s28, 1
      %p497 = scmp.lt.s32.totalorder %s494, 15
      %s498 = scalar_select %p497, %s494, 15
      %s499 = smul.addr %s498, 2
      %s500 = smul.addr %s496, 32
      %s501 = sadd.s32 %s499, %s500
      %s502 = smul.addr %s501, 4
      %s503 = scalar_lea.vmem %s1, %s502
      %p504 = pneg %p95
      %p505 = pneg %p92
      %s506 = smul.u32 %s29, 8
      %s507 = sadd.s32 %s506, 8
      %p508 = scmp.lt.s32.totalorder %s507, 15
      %s509 = scalar_select %p508, %s507, 15
      %p510 = scmp.lt.s32.totalorder %s28, 1
      %s511 = scalar_select %p510, %s28, 1
      %p512 = scmp.lt.s32.totalorder %s509, 15
      %s513 = scalar_select %p512, %s509, 15
      %s514 = smul.addr %s513, 2
      %s515 = smul.addr %s511, 32
      %s516 = sadd.s32 %s514, %s515
      %s517 = smul.addr %s516, 4
      %s518 = scalar_lea.vmem %s2, %s517
      %p519 = pneg %p131
      %p520 = pneg %p128
      %p521 = pneg %p152
      %p522 = pneg %p149
      %p523 = pneg %p173
      %p524 = pneg %p170
      %p525 = pneg %p194
      %p526 = pneg %p191
      %p527 = pneg %p215
      %p528 = pneg %p212
      %p529 = pneg %p236
      %p530 = pneg %p233
      %p531 = pneg %p257
      %p532 = pneg %p254
      %p533 = pneg %p278
      %p534 = pneg %p275
      %p535 = pneg %p299
      %p536 = pneg %p296
      %p537 = pneg %p320
      %p538 = pneg %p317
      %p539 = pneg %p341
      %p540 = pneg %p338
      %p541 = pneg %p369
      %p542 = pneg %p366
      %s543 = smul.u32 8, %s29
      %p544 = scmp.lt.s32.totalorder %s28, 1
      %s545 = scalar_select %p544, %s28, 1
      %p546 = scmp.lt.s32.totalorder %s543, 15
      %s547 = scalar_select %p546, %s543, 15
      %s548 = smul.addr %s547, 2
      %s549 = smul.addr %s545, 32
      %s550 = sadd.s32 %s548, %s549
      %s551 = smul.addr %s550, 4
      %s552 = scalar_lea.vmem %s13, %s551
      %s553 = smul.u32 %s29, 8
      %s554 = ssub.s32 %s553, 1
      %p555 = scmp.gt.s32.totalorder %s554, 0
      %s556 = scalar_select %p555, %s554, 0
      %p557 = scmp.lt.s32.totalorder %s28, 1
      %s558 = scalar_select %p557, %s28, 1
      %p559 = scmp.lt.s32.totalorder %s556, 15
      %s560 = scalar_select %p559, %s556, 15
      %s561 = smul.addr %s560, 2
      %s562 = smul.addr %s558, 32
      %s563 = sadd.s32 %s561, %s562
      %s564 = smul.addr %s563, 4
      %s565 = scalar_lea.vmem %s0, %s564
      %s566 = smul.u32 %s29, 8
      %s567 = ssub.s32 %s566, 1
      %p568 = scmp.gt.s32.totalorder %s567, 0
      %s569 = scalar_select %p568, %s567, 0
      %s570 = smul.u32 8, %s29
      %p571 = scmp.lt.s32.totalorder %s28, 1
      %s572 = scalar_select %p571, %s28, 1
      %p573 = scmp.lt.s32.totalorder %s570, 15
      %s574 = scalar_select %p573, %s570, 15
      %s575 = smul.addr %s574, 2
      %s576 = smul.addr %s572, 32
      %s577 = sadd.s32 %s575, %s576
      %s578 = smul.addr %s577, 4
      %s579 = scalar_lea.vmem %s1, %s578
      %s580 = smul.u32 8, %s29
      %s581 = smul.u32 %s29, 8
      %s582 = sadd.s32 %s581, 8
      %p583 = scmp.lt.s32.totalorder %s582, 15
      %s584 = scalar_select %p583, %s582, 15
      %p585 = scmp.lt.s32.totalorder %s28, 1
      %s586 = scalar_select %p585, %s28, 1
      %p587 = scmp.lt.s32.totalorder %s584, 15
      %s588 = scalar_select %p587, %s584, 15
      %s589 = smul.addr %s588, 2
      %s590 = smul.addr %s586, 32
      %s591 = sadd.s32 %s589, %s590
      %s592 = smul.addr %s591, 4
      %s593 = scalar_lea.vmem %s2, %s592
      %s594 = smul.u32 %s29, 8
      %s595 = sadd.s32 %s594, 8
      %p596 = scmp.lt.s32.totalorder %s595, 15
      %s597 = scalar_select %p596, %s595, 15
      %s598 = smul.u32 8, %s29
      %p599 = scmp.lt.s32.totalorder %s28, 1
      %s600 = scalar_select %p599, %s28, 1
      %p601 = scmp.lt.s32.totalorder %s598, 15
      %s602 = scalar_select %p601, %s598, 15
      %s603 = smul.addr %s602, 2
      %s604 = smul.addr %s600, 32
      %s605 = sadd.s32 %s603, %s604
      %s606 = smul.addr %s605, 4
      %s607 = scalar_lea.vmem %s13, %s606
      %s608 = smul.u32 8, %s29
      %v610 = vld [vmem:[%s579] sm:$0xf]
      %v611 = vld [vmem:[%s579 + $0x4] sm:$0xf]
      %v612 = vld [vmem:[%s579 + $0x8] sm:$0xf]
      %v613 = vld [vmem:[%s579 + $0xc] sm:$0xf]
      %v614 = vld [vmem:[%s579 + $0x10] sm:$0xf]
      %v615 = vld [vmem:[%s579 + $0x14] sm:$0xf]
      %v616 = vld [vmem:[%s579 + $0x18] sm:$0xf]
      %v617 = vld [vmem:[%s579 + $0x1c] sm:$0xf]
      %v618 = vld [vmem:[%s579 + $0x20] sm:$0xf]
      %v619 = vld [vmem:[%s579 + $0x24] sm:$0xf]
      %v620 = vld [vmem:[%s579 + $0x28] sm:$0xf]
      %v621 = vld [vmem:[%s579 + $0x2c] sm:$0xf]
      %v622 = vld [vmem:[%s579 + $0x30] sm:$0xf]
      %v623 = vld [vmem:[%s579 + $0x34] sm:$0xf]
      %v624 = vld [vmem:[%s579 + $0x38] sm:$0xf]
      %v625 = vld [vmem:[%s579 + $0x3c] sm:$0xf]
      %v626 = vunpack.c.l.bf16 %v610
      %v627 = vunpack.c.l.bf16 %v611
      %v628 = vunpack.c.l.bf16 %v612
      %v629 = vunpack.c.l.bf16 %v613
      %v630 = vunpack.c.l.bf16 %v614
      %v631 = vunpack.c.l.bf16 %v615
      %v632 = vunpack.c.l.bf16 %v616
      %v633 = vunpack.c.l.bf16 %v617
      %v634 = vunpack.c.l.bf16 %v618
      %v635 = vunpack.c.l.bf16 %v619
      %v636 = vunpack.c.l.bf16 %v620
      %v637 = vunpack.c.l.bf16 %v621
      %v638 = vunpack.c.l.bf16 %v622
      %v639 = vunpack.c.l.bf16 %v623
      %v640 = vunpack.c.l.bf16 %v624
      %v641 = vunpack.c.l.bf16 %v625
      %v642 = vld [vmem:[%s565] sm:$0xf]
      %v643 = vld [vmem:[%s565 + $0x4] sm:$0xf]
      %v644 = vunpack.c.l.bf16 %v642
      %v645 = vunpack.c.l.bf16 %v643
      %v646 = vld [vmem:[%s593] sm:$0xf]
      %v647 = vld [vmem:[%s593 + $0x4] sm:$0xf]
      %v648 = vunpack.c.l.bf16 %v646
      %v649 = vunpack.c.l.bf16 %v647
      %v650 = vld [vmem:[%s3] sm:$0x1]
      %v652 = vlaneseq
      %v653 = vshrl.u32 %v652, 7
      %v654 = vsub.s32 0, %v653
      %v655 = vrot.slane %v650, %v654
      %v657 = vmul.f32 %v644, %v655
      %v658 = vmul.f32 %v645, %v655
      %v659 = vmul.f32 %v626, %v655
      %v660 = vmul.f32 %v627, %v655
      %v661 = vmul.f32 %v628, %v655
      %v662 = vmul.f32 %v629, %v655
      %v663 = vmul.f32 %v630, %v655
      %v664 = vmul.f32 %v631, %v655
      %v665 = vmul.f32 %v632, %v655
      %v666 = vmul.f32 %v633, %v655
      %v667 = vmul.f32 %v634, %v655
      %v668 = vmul.f32 %v635, %v655
      %v669 = vmul.f32 %v636, %v655
      %v670 = vmul.f32 %v637, %v655
      %v671 = vmul.f32 %v638, %v655
      %v672 = vmul.f32 %v639, %v655
      %v673 = vmul.f32 %v640, %v655
      %v674 = vmul.f32 %v641, %v655
      %v675 = vmul.f32 %v648, %v655
      %v676 = vmul.f32 %v649, %v655
      %v677 = vld [vmem:[%s4] sm:$0x1]
      %v679 = vlaneseq
      %v680 = vshrl.u32 %v679, 7
      %v681 = vsub.s32 0, %v680
      %v682 = vrot.slane %v677, %v681
      %v684 = vadd.f32 %v657, %v682
      %v685 = vadd.f32 %v658, %v682
      %v686 = vadd.f32 %v659, %v682
      %v687 = vadd.f32 %v660, %v682
      %v688 = vadd.f32 %v661, %v682
      %v689 = vadd.f32 %v662, %v682
      %v690 = vadd.f32 %v663, %v682
      %v691 = vadd.f32 %v664, %v682
      %v692 = vadd.f32 %v665, %v682
      %v693 = vadd.f32 %v666, %v682
      %v694 = vadd.f32 %v667, %v682
      %v695 = vadd.f32 %v668, %v682
      %v696 = vadd.f32 %v669, %v682
      %v697 = vadd.f32 %v670, %v682
      %v698 = vadd.f32 %v671, %v682
      %v699 = vadd.f32 %v672, %v682
      %v700 = vadd.f32 %v673, %v682
      %v701 = vadd.f32 %v674, %v682
      %v702 = vadd.f32 %v675, %v682
      %v703 = vadd.f32 %v676, %v682
      %v704 = vmax.f32 %v684, 0.0
      %v705 = vmax.f32 %v685, 0.0
      %v706 = vmax.f32 %v686, 0.0
      %v707 = vmax.f32 %v687, 0.0
      %v708 = vmax.f32 %v688, 0.0
      %v709 = vmax.f32 %v689, 0.0
      %v710 = vmax.f32 %v690, 0.0
      %v711 = vmax.f32 %v691, 0.0
      %v712 = vmax.f32 %v692, 0.0
      %v713 = vmax.f32 %v693, 0.0
      %v714 = vmax.f32 %v694, 0.0
      %v715 = vmax.f32 %v695, 0.0
      %v716 = vmax.f32 %v696, 0.0
      %v717 = vmax.f32 %v697, 0.0
      %v718 = vmax.f32 %v698, 0.0
      %v719 = vmax.f32 %v699, 0.0
      %v720 = vmax.f32 %v700, 0.0
      %v721 = vmax.f32 %v701, 0.0
      %v722 = vmax.f32 %v702, 0.0
      %v723 = vmax.f32 %v703, 0.0
      %v724 = vpack.c.bf16 %v705, %v704
      %v725 = vpack.c.bf16 %v707, %v706
      %v726 = vpack.c.bf16 %v709, %v708
      %v727 = vpack.c.bf16 %v711, %v710
      %v728 = vpack.c.bf16 %v713, %v712
      %v729 = vpack.c.bf16 %v715, %v714
      %v730 = vpack.c.bf16 %v717, %v716
      %v731 = vpack.c.bf16 %v719, %v718
      %v732 = vpack.c.bf16 %v721, %v720
      %v733 = vpack.c.bf16 %v723, %v722
      %v734 = vld [vmem:[%s5] sm:$0x3]
      %vm735 = vcmask 31744
      %v737 = vsel %vm735, %v724, 0
      %v740 = vsel %vm735, %v725, 0
      %v743 = vsel %vm735, %v726, 0
      %v746 = vsel %vm735, %v727, 0
      %v749 = vsel %vm735, %v728, 0
      %v752 = vsel %vm735, %v729, 0
      %v755 = vsel %vm735, %v730, 0
      %v758 = vsel %vm735, %v731, 0
      %v761 = vsel %vm735, %v732, 0
      %v764 = vsel %vm735, %v733, 0
      %vm766 = vcmask 1041408
      %v768 = vsel %vm766, %v734, 0
      %770 = vmatprep.subr.bf16.mxu0 0
      %771 = vmatpush1.bf16.msra.mxu0 0
      %772 = vmatprep.subr.bf16.mxu0 0
      %773 = vmatpush1.bf16.msra.mxu0 0
      %774 = vmatprep.subr.bf16.mxu0 0
      %775 = vmatpush1.bf16.msra.mxu0 0
      %776 = vmatprep.subr.bf16.mxu0 0
      %777 = vmatpush1.bf16.msra.mxu0 0
      %778 = vmatprep.subr.bf16.mxu0 0
      %779 = vmatpush1.bf16.msra.mxu0 0
      %780 = vmatprep.subr.bf16.mxu0 0
      %781 = vmatpush1.bf16.msra.mxu0 0
      %782 = vmatprep.subr.bf16.mxu0 0
      %783 = vmatpush1.bf16.msra.mxu0 0
      %784 = vmatprep.subr.bf16.mxu0 0
      %785 = vmatpush1.bf16.msra.mxu0 %v768
      %786 = vmatprep.subr.bf16.mxu0 0
      %787 = vmatpush2.bf16.msra.mxu0 0
      %788 = vmatprep.subr.bf16.mxu0 0
      %789 = vmatpush2.bf16.msra.mxu0 0
      %790 = vmatprep.subr.bf16.mxu0 0
      %791 = vmatpush2.bf16.msra.mxu0 0
      %792 = vmatprep.subr.bf16.mxu0 0
      %793 = vmatpush2.bf16.msra.mxu0 0
      %794 = vmatprep.subr.bf16.mxu0 0
      %795 = vmatpush2.bf16.msra.mxu0 0
      %796 = vmatprep.subr.bf16.mxu0 0
      %797 = vmatpush2.bf16.msra.mxu0 0
      %798 = vmatprep.subr.bf16.mxu0 0
      %799 = vmatpush2.bf16.msra.mxu0 0
      %800 = vmatprep.subr.bf16.mxu0 0
      %801 = vmatpush2.bf16.msra.mxu0 0
      %802 = vmatprep.mubr.bf16.mxu0 0
      %803 = vmatmul.mubr.bf16.gmra.mxu0 %v737
      %v804 = vpop.f32.mrf.mxu0
      %v805 = vadd.f32 0.0, %v804
      %v806 = vpop.f32.mrf.mxu0
      %v807 = vpop.f32.mrf.mxu0
      %v808 = vadd.f32 0.0, %v807
      %v809 = vpop.f32.mrf.mxu0
      %810 = vmatprep.mubr.bf16.mxu0 0
      %811 = vmatmul.mubr.bf16.gmra.mxu0 %v740
      %v812 = vpop.f32.mrf.mxu0
      %v813 = vadd.f32 0.0, %v812
      %v814 = vpop.f32.mrf.mxu0
      %v815 = vpop.f32.mrf.mxu0
      %v816 = vadd.f32 0.0, %v815
      %v817 = vpop.f32.mrf.mxu0
      %818 = vmatprep.mubr.bf16.mxu0 0
      %819 = vmatmul.mubr.bf16.gmra.mxu0 %v743
      %v820 = vpop.f32.mrf.mxu0
      %v821 = vadd.f32 0.0, %v820
      %v822 = vpop.f32.mrf.mxu0
      %v823 = vpop.f32.mrf.mxu0
      %v824 = vadd.f32 0.0, %v823
      %v825 = vpop.f32.mrf.mxu0
      %826 = vmatprep.mubr.bf16.mxu0 0
      %827 = vmatmul.mubr.bf16.gmra.mxu0 %v746
      %v828 = vpop.f32.mrf.mxu0
      %v829 = vadd.f32 0.0, %v828
      %v830 = vpop.f32.mrf.mxu0
      %v831 = vpop.f32.mrf.mxu0
      %v832 = vadd.f32 0.0, %v831
      %v833 = vpop.f32.mrf.mxu0
      %834 = vmatprep.mubr.bf16.mxu0 0
      %835 = vmatmul.mubr.bf16.gmra.mxu0 %v749
      %v836 = vpop.f32.mrf.mxu0
      %v837 = vadd.f32 0.0, %v836
      %v838 = vpop.f32.mrf.mxu0
      %v839 = vpop.f32.mrf.mxu0
      %v840 = vadd.f32 0.0, %v839
      %v841 = vpop.f32.mrf.mxu0
      %842 = vmatprep.mubr.bf16.mxu0 0
      %843 = vmatmul.mubr.bf16.gmra.mxu0 %v752
      %v844 = vpop.f32.mrf.mxu0
      %v845 = vadd.f32 0.0, %v844
      %v846 = vpop.f32.mrf.mxu0
      %v847 = vpop.f32.mrf.mxu0
      %v848 = vadd.f32 0.0, %v847
      %v849 = vpop.f32.mrf.mxu0
      %850 = vmatprep.mubr.bf16.mxu0 0
      %851 = vmatmul.mubr.bf16.gmra.mxu0 %v755
      %v852 = vpop.f32.mrf.mxu0
      %v853 = vadd.f32 0.0, %v852
      %v854 = vpop.f32.mrf.mxu0
      %v855 = vpop.f32.mrf.mxu0
      %v856 = vadd.f32 0.0, %v855
      %v857 = vpop.f32.mrf.mxu0
      %858 = vmatprep.mubr.bf16.mxu0 0
      %859 = vmatmul.mubr.bf16.gmra.mxu0 %v758
      %v860 = vpop.f32.mrf.mxu0
      %v861 = vadd.f32 0.0, %v860
      %v862 = vpop.f32.mrf.mxu0
      %v863 = vpop.f32.mrf.mxu0
      %v864 = vadd.f32 0.0, %v863
      %v865 = vpop.f32.mrf.mxu0
      %866 = vmatprep.mubr.bf16.mxu0 0
      %867 = vmatmul.mubr.bf16.gmra.mxu0 %v761
      %v868 = vpop.f32.mrf.mxu0
      %v869 = vadd.f32 0.0, %v868
      %v870 = vpop.f32.mrf.mxu0
      %v871 = vpop.f32.mrf.mxu0
      %v872 = vadd.f32 0.0, %v871
      %v873 = vpop.f32.mrf.mxu0
      %874 = vmatprep.mubr.bf16.mxu0 0
      %875 = vmatmul.mubr.bf16.gmra.mxu0 %v764
      %v876 = vpop.f32.mrf.mxu0
      %v877 = vadd.f32 0.0, %v876
      %v878 = vpop.f32.mrf.mxu0
      %v879 = vpop.f32.mrf.mxu0
      %v880 = vadd.f32 0.0, %v879
      %v881 = vpop.f32.mrf.mxu0
      %882 = vdwg.mxu0
      %v883 = vld [vmem:[%s6] sm:$0x1]
      %v885 = vlaneseq
      %v886 = vshrl.u32 %v885, 7
      %v887 = vsub.s32 0, %v886
      %v888 = vrot.slane %v883, %v887
      %v890 = vmul.f32 %v805, %v888
      %v891 = vmul.f32 %v808, %v888
      %v892 = vmul.f32 %v813, %v888
      %v893 = vmul.f32 %v816, %v888
      %v894 = vmul.f32 %v821, %v888
      %v895 = vmul.f32 %v824, %v888
      %v896 = vmul.f32 %v829, %v888
      %v897 = vmul.f32 %v832, %v888
      %v898 = vmul.f32 %v837, %v888
      %v899 = vmul.f32 %v840, %v888
      %v900 = vmul.f32 %v845, %v888
      %v901 = vmul.f32 %v848, %v888
      %v902 = vmul.f32 %v853, %v888
      %v903 = vmul.f32 %v856, %v888
      %v904 = vmul.f32 %v861, %v888
      %v905 = vmul.f32 %v864, %v888
      %v906 = vmul.f32 %v869, %v888
      %v907 = vmul.f32 %v872, %v888
      %v908 = vmul.f32 %v877, %v888
      %v909 = vmul.f32 %v880, %v888
      %v910 = vld [vmem:[%s7] sm:$0x1]
      %v912 = vlaneseq
      %v913 = vshrl.u32 %v912, 7
      %v914 = vsub.s32 0, %v913
      %v915 = vrot.slane %v910, %v914
      %v917 = vadd.f32 %v890, %v915
      %v918 = vadd.f32 %v891, %v915
      %v919 = vadd.f32 %v892, %v915
      %v920 = vadd.f32 %v893, %v915
      %v921 = vadd.f32 %v894, %v915
      %v922 = vadd.f32 %v895, %v915
      %v923 = vadd.f32 %v896, %v915
      %v924 = vadd.f32 %v897, %v915
      %v925 = vadd.f32 %v898, %v915
      %v926 = vadd.f32 %v899, %v915
      %v927 = vadd.f32 %v900, %v915
      %v928 = vadd.f32 %v901, %v915
      %v929 = vadd.f32 %v902, %v915
      %v930 = vadd.f32 %v903, %v915
      %v931 = vadd.f32 %v904, %v915
      %v932 = vadd.f32 %v905, %v915
      %v933 = vadd.f32 %v906, %v915
      %v934 = vadd.f32 %v907, %v915
      %v935 = vadd.f32 %v908, %v915
      %v936 = vadd.f32 %v909, %v915
      %v937 = vmax.f32 %v917, 0.0
      %v938 = vmax.f32 %v918, 0.0
      %v939 = vmax.f32 %v919, 0.0
      %v940 = vmax.f32 %v920, 0.0
      %v941 = vmax.f32 %v921, 0.0
      %v942 = vmax.f32 %v922, 0.0
      %v943 = vmax.f32 %v923, 0.0
      %v944 = vmax.f32 %v924, 0.0
      %v945 = vmax.f32 %v925, 0.0
      %v946 = vmax.f32 %v926, 0.0
      %v947 = vmax.f32 %v927, 0.0
      %v948 = vmax.f32 %v928, 0.0
      %v949 = vmax.f32 %v929, 0.0
      %v950 = vmax.f32 %v930, 0.0
      %v951 = vmax.f32 %v931, 0.0
      %v952 = vmax.f32 %v932, 0.0
      %v953 = vmax.f32 %v933, 0.0
      %v954 = vmax.f32 %v934, 0.0
      %v955 = vmax.f32 %v935, 0.0
      %v956 = vmax.f32 %v936, 0.0
      %p957 = scmp.gt.s32.totalorder %s29, 0
      %s958 = scalar_select %p957, 1, 0
      %v959 = vstv %s958
      %vm960 = vcmp.eq.s32.totalorder %v959, 1
      %p961 = scmp.lt.s32.totalorder %s29, 1
      %s962 = scalar_select %p961, 1, 0
      %v963 = vstv %s962
      %vm964 = vcmp.eq.s32.totalorder %v963, 1
      %v965 = vsel %vm960, 1, 0
      %v966 = vsel %vm964, 1, 0
      %vm967 = vcmp.eq.s32.totalorder %v965, 1
      %vm968 = vcmp.eq.s32.totalorder %v966, 1
      %v969 = vsel %vm967, %v937, 0.0
      %v970 = vsel %vm967, %v938, 0.0
      %v971 = vsel 1, %v939, 0.0
      %v972 = vsel 1, %v940, 0.0
      %v973 = vsel 1, %v941, 0.0
      %v974 = vsel 1, %v942, 0.0
      %v975 = vsel 1, %v943, 0.0
      %v976 = vsel 1, %v944, 0.0
      %v977 = vsel 1, %v945, 0.0
      %v978 = vsel 1, %v946, 0.0
      %v979 = vsel 1, %v947, 0.0
      %v980 = vsel 1, %v948, 0.0
      %v981 = vsel 1, %v949, 0.0
      %v982 = vsel 1, %v950, 0.0
      %v983 = vsel 1, %v951, 0.0
      %v984 = vsel 1, %v952, 0.0
      %v985 = vsel 1, %v953, 0.0
      %v986 = vsel 1, %v954, 0.0
      %v987 = vsel %vm968, %v955, 0.0
      %v988 = vsel %vm968, %v956, 0.0
      %v989 = vlaneseq
      %v990 = vshrl.u32 %v989, 7
      %v991 = vadd.s32 %v990, 8
      %vm992 = vcmp.gt.s32.totalorder %v990, 0
      %vm993 = vcmp.gt.s32.totalorder %v991, 0
      %v994 = vrot.slane %v969, 7
      %v995 = vrot.slane %v971, 7
      %v996 = vrot.slane %v973, 7
      %v997 = vrot.slane %v975, 7
      %v998 = vrot.slane %v977, 7
      %v999 = vrot.slane %v979, 7
      %v1000 = vrot.slane %v981, 7
      %v1001 = vrot.slane %v983, 7
      %v1002 = vrot.slane %v985, 7
      %v1003 = vrot.slane %v987, 7
      %v1004 = vrot.slane %v970, 7
      %v1005 = vrot.slane %v972, 7
      %v1006 = vrot.slane %v974, 7
      %v1007 = vrot.slane %v976, 7
      %v1008 = vrot.slane %v978, 7
      %v1009 = vrot.slane %v980, 7
      %v1010 = vrot.slane %v982, 7
      %v1011 = vrot.slane %v984, 7
      %v1012 = vrot.slane %v986, 7
      %v1013 = vrot.slane %v988, 7
      %vm1014 = vcmp.lt.s32.totalorder %v990, 1
      %v1015 = vsel %vm1014, %v994, %v1004
      %v1016 = vsel %vm1014, %v995, %v1005
      %v1017 = vsel %vm1014, %v996, %v1006
      %v1018 = vsel %vm1014, %v997, %v1007
      %v1019 = vsel %vm1014, %v998, %v1008
      %v1020 = vsel %vm1014, %v999, %v1009
      %v1021 = vsel %vm1014, %v1000, %v1010
      %v1022 = vsel %vm1014, %v1001, %v1011
      %v1023 = vsel %vm1014, %v1002, %v1012
      %v1024 = vsel %vm1014, %v1003, %v1013
      %v1025 = vsel %vm1014, %v1004, %v994
      %v1026 = vsel %vm1014, %v1005, %v995
      %v1027 = vsel %vm1014, %v1006, %v996
      %v1028 = vsel %vm1014, %v1007, %v997
      %v1029 = vsel %vm1014, %v1008, %v998
      %v1030 = vsel %vm1014, %v1009, %v999
      %v1031 = vsel %vm1014, %v1010, %v1000
      %v1032 = vsel %vm1014, %v1011, %v1001
      %v1033 = vsel %vm1014, %v1012, %v1002
      %v1034 = vsel %vm1014, %v1013, %v1003
      %v1035 = vsel %vm992, 1, 0
      %v1036 = vsel %vm993, 1, 0
      %vm1037 = vcmp.eq.s32.totalorder %v1035, 1
      %vm1038 = vcmp.eq.s32.totalorder %v1036, 1
      %v1039 = vsel %vm1037, %v1025, 0.0
      %v1040 = vsel %vm1038, %v1015, 0.0
      %v1041 = vsel %vm1037, %v1026, 0.0
      %v1042 = vsel %vm1038, %v1016, 0.0
      %v1043 = vsel %vm1037, %v1027, 0.0
      %v1044 = vsel %vm1038, %v1017, 0.0
      %v1045 = vsel %vm1037, %v1028, 0.0
      %v1046 = vsel %vm1038, %v1018, 0.0
      %v1047 = vsel %vm1037, %v1029, 0.0
      %v1048 = vsel %vm1038, %v1019, 0.0
      %v1049 = vsel %vm1037, %v1030, 0.0
      %v1050 = vsel %vm1038, %v1020, 0.0
      %v1051 = vsel %vm1037, %v1031, 0.0
      %v1052 = vsel %vm1038, %v1021, 0.0
      %v1053 = vsel %vm1037, %v1032, 0.0
      %v1054 = vsel %vm1038, %v1022, 0.0
      %v1055 = vsel %vm1037, %v1033, 0.0
      %v1056 = vsel %vm1038, %v1023, 0.0
      %v1057 = vsel %vm1037, %v1034, 0.0
      %v1058 = vsel %vm1038, %v1024, 0.0
      %vm1059 = vcmp.lt.s32.totalorder %v990, 15
      %vm1060 = vcmp.lt.s32.totalorder %v991, 15
      %v1061 = vrot.slane %v969, 1
      %v1062 = vrot.slane %v971, 1
      %v1063 = vrot.slane %v973, 1
      %v1064 = vrot.slane %v975, 1
      %v1065 = vrot.slane %v977, 1
      %v1066 = vrot.slane %v979, 1
      %v1067 = vrot.slane %v981, 1
      %v1068 = vrot.slane %v983, 1
      %v1069 = vrot.slane %v985, 1
      %v1070 = vrot.slane %v987, 1
      %v1071 = vrot.slane %v970, 1
      %v1072 = vrot.slane %v972, 1
      %v1073 = vrot.slane %v974, 1
      %v1074 = vrot.slane %v976, 1
      %v1075 = vrot.slane %v978, 1
      %v1076 = vrot.slane %v980, 1
      %v1077 = vrot.slane %v982, 1
      %v1078 = vrot.slane %v984, 1
      %v1079 = vrot.slane %v986, 1
      %v1080 = vrot.slane %v988, 1
      %vm1081 = vcmp.lt.s32.totalorder %v990, 7
      %v1082 = vsel %vm1081, %v1061, %v1071
      %v1083 = vsel %vm1081, %v1062, %v1072
      %v1084 = vsel %vm1081, %v1063, %v1073
      %v1085 = vsel %vm1081, %v1064, %v1074
      %v1086 = vsel %vm1081, %v1065, %v1075
      %v1087 = vsel %vm1081, %v1066, %v1076
      %v1088 = vsel %vm1081, %v1067, %v1077
      %v1089 = vsel %vm1081, %v1068, %v1078
      %v1090 = vsel %vm1081, %v1069, %v1079
      %v1091 = vsel %vm1081, %v1070, %v1080
      %v1092 = vsel %vm1081, %v1071, %v1061
      %v1093 = vsel %vm1081, %v1072, %v1062
      %v1094 = vsel %vm1081, %v1073, %v1063
      %v1095 = vsel %vm1081, %v1074, %v1064
      %v1096 = vsel %vm1081, %v1075, %v1065
      %v1097 = vsel %vm1081, %v1076, %v1066
      %v1098 = vsel %vm1081, %v1077, %v1067
      %v1099 = vsel %vm1081, %v1078, %v1068
      %v1100 = vsel %vm1081, %v1079, %v1069
      %v1101 = vsel %vm1081, %v1080, %v1070
      %v1102 = vsel %vm1059, 1, 0
      %v1103 = vsel %vm1060, 1, 0
      %vm1104 = vcmp.eq.s32.totalorder %v1102, 1
      %vm1105 = vcmp.eq.s32.totalorder %v1103, 1
      %v1106 = vsel %vm1104, %v1082, 0.0
      %v1107 = vsel %vm1105, %v1092, 0.0
      %v1108 = vsel %vm1104, %v1083, 0.0
      %v1109 = vsel %vm1105, %v1093, 0.0
      %v1110 = vsel %vm1104, %v1084, 0.0
      %v1111 = vsel %vm1105, %v1094, 0.0
      %v1112 = vsel %vm1104, %v1085, 0.0
      %v1113 = vsel %vm1105, %v1095, 0.0
      %v1114 = vsel %vm1104, %v1086, 0.0
      %v1115 = vsel %vm1105, %v1096, 0.0
      %v1116 = vsel %vm1104, %v1087, 0.0
      %v1117 = vsel %vm1105, %v1097, 0.0
      %v1118 = vsel %vm1104, %v1088, 0.0
      %v1119 = vsel %vm1105, %v1098, 0.0
      %v1120 = vsel %vm1104, %v1089, 0.0
      %v1121 = vsel %vm1105, %v1099, 0.0
      %v1122 = vsel %vm1104, %v1090, 0.0
      %v1123 = vsel %vm1105, %v1100, 0.0
      %v1124 = vsel %vm1104, %v1091, 0.0
      %v1125 = vsel %vm1105, %v1101, 0.0
      %v1126 = vpack.c.bf16 %v1040, %v1039
      %v1127 = vpack.c.bf16 %v1042, %v1041
      %v1128 = vpack.c.bf16 %v1044, %v1043
      %v1129 = vpack.c.bf16 %v1046, %v1045
      %v1130 = vpack.c.bf16 %v1048, %v1047
      %v1131 = vpack.c.bf16 %v1050, %v1049
      %v1132 = vpack.c.bf16 %v1052, %v1051
      %v1133 = vpack.c.bf16 %v1054, %v1053
      %v1134 = vpack.c.bf16 %v1056, %v1055
      %v1135 = vpack.c.bf16 %v1058, %v1057
      %v1136 = vpack.c.bf16 %v970, %v969
      %v1137 = vpack.c.bf16 %v972, %v971
      %v1138 = vpack.c.bf16 %v974, %v973
      %v1139 = vpack.c.bf16 %v976, %v975
      %v1140 = vpack.c.bf16 %v978, %v977
      %v1141 = vpack.c.bf16 %v980, %v979
      %v1142 = vpack.c.bf16 %v982, %v981
      %v1143 = vpack.c.bf16 %v984, %v983
      %v1144 = vpack.c.bf16 %v986, %v985
      %v1145 = vpack.c.bf16 %v988, %v987
      %v1146 = vpack.c.bf16 %v1107, %v1106
      %v1147 = vpack.c.bf16 %v1109, %v1108
      %v1148 = vpack.c.bf16 %v1111, %v1110
      %v1149 = vpack.c.bf16 %v1113, %v1112
      %v1150 = vpack.c.bf16 %v1115, %v1114
      %v1151 = vpack.c.bf16 %v1117, %v1116
      %v1152 = vpack.c.bf16 %v1119, %v1118
      %v1153 = vpack.c.bf16 %v1121, %v1120
      %v1154 = vpack.c.bf16 %v1123, %v1122
      %v1155 = vpack.c.bf16 %v1125, %v1124
      %1166 = vrot.lane.b32.xlu0 %v1136, 2
      %v1167 = vpop.permute.xlu0 %1166
      %1168 = vrot.lane.b32.xlu0 %v1137, 2
      %v1169 = vpop.permute.xlu0 %1168
      %1170 = vrot.lane.b32.xlu0 %v1138, 2
      %v1171 = vpop.permute.xlu0 %1170
      %1172 = vrot.lane.b32.xlu0 %v1139, 2
      %v1173 = vpop.permute.xlu0 %1172
      %1174 = vrot.lane.b32.xlu0 %v1140, 2
      %v1175 = vpop.permute.xlu0 %1174
      %1176 = vrot.lane.b32.xlu0 %v1141, 2
      %v1177 = vpop.permute.xlu0 %1176
      %1178 = vrot.lane.b32.xlu0 %v1142, 2
      %v1179 = vpop.permute.xlu0 %1178
      %1180 = vrot.lane.b32.xlu0 %v1143, 2
      %v1181 = vpop.permute.xlu0 %1180
      %1182 = vrot.lane.b32.xlu0 %v1144, 2
      %v1183 = vpop.permute.xlu0 %1182
      %1184 = vrot.lane.b32.xlu0 %v1145, 2
      %v1185 = vpop.permute.xlu0 %1184
      %1196 = vrot.lane.b32.xlu0 %v1146, 4
      %v1197 = vpop.permute.xlu0 %1196
      %1198 = vrot.lane.b32.xlu0 %v1147, 4
      %v1199 = vpop.permute.xlu0 %1198
      %1200 = vrot.lane.b32.xlu0 %v1148, 4
      %v1201 = vpop.permute.xlu0 %1200
      %1202 = vrot.lane.b32.xlu0 %v1149, 4
      %v1203 = vpop.permute.xlu0 %1202
      %1204 = vrot.lane.b32.xlu0 %v1150, 4
      %v1205 = vpop.permute.xlu0 %1204
      %1206 = vrot.lane.b32.xlu0 %v1151, 4
      %v1207 = vpop.permute.xlu0 %1206
      %1208 = vrot.lane.b32.xlu0 %v1152, 4
      %v1209 = vpop.permute.xlu0 %1208
      %1210 = vrot.lane.b32.xlu0 %v1153, 4
      %v1211 = vpop.permute.xlu0 %1210
      %1212 = vrot.lane.b32.xlu0 %v1154, 4
      %v1213 = vpop.permute.xlu0 %1212
      %1214 = vrot.lane.b32.xlu0 %v1155, 4
      %v1215 = vpop.permute.xlu0 %1214
      %vm1216 = vcmask 15360
      %v1219 = vsel %vm1216, %v1126, %v1167
      %v1222 = vsel %vm1216, %v1127, %v1169
      %v1225 = vsel %vm1216, %v1128, %v1171
      %v1228 = vsel %vm1216, %v1129, %v1173
      %v1231 = vsel %vm1216, %v1130, %v1175
      %v1234 = vsel %vm1216, %v1131, %v1177
      %v1237 = vsel %vm1216, %v1132, %v1179
      %v1240 = vsel %vm1216, %v1133, %v1181
      %v1243 = vsel %vm1216, %v1134, %v1183
      %v1246 = vsel %vm1216, %v1135, %v1185
      %v1248 = vsel %vm735, %v1219, %v1197
      %v1250 = vsel %vm735, %v1222, %v1199
      %v1252 = vsel %vm735, %v1225, %v1201
      %v1254 = vsel %vm735, %v1228, %v1203
      %v1256 = vsel %vm735, %v1231, %v1205
      %v1258 = vsel %vm735, %v1234, %v1207
      %v1260 = vsel %vm735, %v1237, %v1209
      %v1262 = vsel %vm735, %v1240, %v1211
      %v1264 = vsel %vm735, %v1243, %v1213
      %v1266 = vsel %vm735, %v1246, %v1215
      %v1267 = vld [vmem:[%s8] sm:$0x7]
      %s1268 = scalar_lea.vmem %s8, 4
      %v1269 = vld [vmem:[%s1268] sm:$0x7]
      %vm1270 = vcmask 48128
      %v1271 = vsel %vm1270, %v1250, 0
      %v1273 = vsel %vm1270, %v1252, 0
      %v1275 = vsel %vm1270, %v1254, 0
      %v1277 = vsel %vm1270, %v1256, 0
      %v1279 = vsel %vm1270, %v1258, 0
      %v1281 = vsel %vm1270, %v1260, 0
      %v1283 = vsel %vm1270, %v1262, 0
      %v1285 = vsel %vm1270, %v1264, 0
      %vm1287 = vcmask 1042432
      %v1289 = vsel %vm1287, %v1269, 0
      %1291 = vmatprep.subr.bf16.mxu0 0
      %1292 = vmatpush1.bf16.msra.mxu0 0
      %1293 = vmatprep.subr.bf16.mxu0 0
      %1294 = vmatpush1.bf16.msra.mxu0 0
      %1295 = vmatprep.subr.bf16.mxu0 0
      %1296 = vmatpush1.bf16.msra.mxu0 0
      %1297 = vmatprep.subr.bf16.mxu0 0
      %1298 = vmatpush1.bf16.msra.mxu0 0
      %1299 = vmatprep.subr.bf16.mxu0 0
      %1300 = vmatpush1.bf16.msra.mxu0 0
      %1301 = vmatprep.subr.bf16.mxu0 0
      %1302 = vmatpush1.bf16.msra.mxu0 0
      %1303 = vmatprep.subr.bf16.mxu0 0
      %1304 = vmatpush1.bf16.msra.mxu0 0
      %1305 = vmatprep.subr.bf16.mxu0 0
      %1306 = vmatpush1.bf16.msra.mxu0 %v1289
      %1307 = vmatprep.subr.bf16.mxu0 0
      %1308 = vmatpush2.bf16.msra.mxu0 0
      %1309 = vmatprep.subr.bf16.mxu0 0
      %1310 = vmatpush2.bf16.msra.mxu0 0
      %1311 = vmatprep.subr.bf16.mxu0 0
      %1312 = vmatpush2.bf16.msra.mxu0 0
      %1313 = vmatprep.subr.bf16.mxu0 0
      %1314 = vmatpush2.bf16.msra.mxu0 0
      %1315 = vmatprep.subr.bf16.mxu0 0
      %1316 = vmatpush2.bf16.msra.mxu0 0
      %1317 = vmatprep.subr.bf16.mxu0 0
      %1318 = vmatpush2.bf16.msra.mxu0 0
      %1319 = vmatprep.subr.bf16.mxu0 0
      %1320 = vmatpush2.bf16.msra.mxu0 0
      %1321 = vmatprep.subr.bf16.mxu0 0
      %1322 = vmatpush2.bf16.msra.mxu0 0
      %1323 = vmatprep.mubr.bf16.mxu0 0
      %1324 = vmatmul.mubr.bf16.gmra.mxu0 %v1271
      %v1325 = vpop.f32.mrf.mxu0
      %v1326 = vadd.f32 0.0, %v1325
      %v1327 = vpop.f32.mrf.mxu0
      %v1328 = vpop.f32.mrf.mxu0
      %v1329 = vadd.f32 0.0, %v1328
      %v1330 = vpop.f32.mrf.mxu0
      %1331 = vmatprep.mubr.bf16.mxu0 0
      %1332 = vmatmul.mubr.bf16.gmra.mxu0 %v1273
      %v1333 = vpop.f32.mrf.mxu0
      %v1334 = vadd.f32 0.0, %v1333
      %v1335 = vpop.f32.mrf.mxu0
      %v1336 = vpop.f32.mrf.mxu0
      %v1337 = vadd.f32 0.0, %v1336
      %v1338 = vpop.f32.mrf.mxu0
      %1339 = vmatprep.mubr.bf16.mxu0 0
      %1340 = vmatmul.mubr.bf16.gmra.mxu0 %v1275
      %v1341 = vpop.f32.mrf.mxu0
      %v1342 = vadd.f32 0.0, %v1341
      %v1343 = vpop.f32.mrf.mxu0
      %v1344 = vpop.f32.mrf.mxu0
      %v1345 = vadd.f32 0.0, %v1344
      %v1346 = vpop.f32.mrf.mxu0
      %1347 = vmatprep.mubr.bf16.mxu0 0
      %1348 = vmatmul.mubr.bf16.gmra.mxu0 %v1277
      %v1349 = vpop.f32.mrf.mxu0
      %v1350 = vadd.f32 0.0, %v1349
      %v1351 = vpop.f32.mrf.mxu0
      %v1352 = vpop.f32.mrf.mxu0
      %v1353 = vadd.f32 0.0, %v1352
      %v1354 = vpop.f32.mrf.mxu0
      %1355 = vmatprep.mubr.bf16.mxu0 0
      %1356 = vmatmul.mubr.bf16.gmra.mxu0 %v1279
      %v1357 = vpop.f32.mrf.mxu0
      %v1358 = vadd.f32 0.0, %v1357
      %v1359 = vpop.f32.mrf.mxu0
      %v1360 = vpop.f32.mrf.mxu0
      %v1361 = vadd.f32 0.0, %v1360
      %v1362 = vpop.f32.mrf.mxu0
      %1363 = vmatprep.mubr.bf16.mxu0 0
      %1364 = vmatmul.mubr.bf16.gmra.mxu0 %v1281
      %v1365 = vpop.f32.mrf.mxu0
      %v1366 = vadd.f32 0.0, %v1365
      %v1367 = vpop.f32.mrf.mxu0
      %v1368 = vpop.f32.mrf.mxu0
      %v1369 = vadd.f32 0.0, %v1368
      %v1370 = vpop.f32.mrf.mxu0
      %1371 = vmatprep.mubr.bf16.mxu0 0
      %1372 = vmatmul.mubr.bf16.gmra.mxu0 %v1283
      %v1373 = vpop.f32.mrf.mxu0
      %v1374 = vadd.f32 0.0, %v1373
      %v1375 = vpop.f32.mrf.mxu0
      %v1376 = vpop.f32.mrf.mxu0
      %v1377 = vadd.f32 0.0, %v1376
      %v1378 = vpop.f32.mrf.mxu0
      %1379 = vmatprep.mubr.bf16.mxu0 0
      %1380 = vmatmul.mubr.bf16.gmra.mxu0 %v1285
      %v1381 = vpop.f32.mrf.mxu0
      %v1382 = vadd.f32 0.0, %v1381
      %v1383 = vpop.f32.mrf.mxu0
      %v1384 = vpop.f32.mrf.mxu0
      %v1385 = vadd.f32 0.0, %v1384
      %v1386 = vpop.f32.mrf.mxu0
      %1387 = vdwg.mxu0
      %v1388 = vsel %vm1270, %v1248, 0
      %v1391 = vsel %vm1287, %v1267, 0
      %1393 = vmatprep.subr.bf16.mxu0 0
      %1394 = vmatpush1.bf16.msra.mxu0 0
      %1395 = vmatprep.subr.bf16.mxu0 0
      %1396 = vmatpush1.bf16.msra.mxu0 0
      %1397 = vmatprep.subr.bf16.mxu0 0
      %1398 = vmatpush1.bf16.msra.mxu0 0
      %1399 = vmatprep.subr.bf16.mxu0 0
      %1400 = vmatpush1.bf16.msra.mxu0 0
      %1401 = vmatprep.subr.bf16.mxu0 0
      %1402 = vmatpush1.bf16.msra.mxu0 0
      %1403 = vmatprep.subr.bf16.mxu0 0
      %1404 = vmatpush1.bf16.msra.mxu0 0
      %1405 = vmatprep.subr.bf16.mxu0 0
      %1406 = vmatpush1.bf16.msra.mxu0 0
      %1407 = vmatprep.subr.bf16.mxu0 0
      %1408 = vmatpush1.bf16.msra.mxu0 %v1391
      %1409 = vmatprep.subr.bf16.mxu0 0
      %1410 = vmatpush2.bf16.msra.mxu0 0
      %1411 = vmatprep.subr.bf16.mxu0 0
      %1412 = vmatpush2.bf16.msra.mxu0 0
      %1413 = vmatprep.subr.bf16.mxu0 0
      %1414 = vmatpush2.bf16.msra.mxu0 0
      %1415 = vmatprep.subr.bf16.mxu0 0
      %1416 = vmatpush2.bf16.msra.mxu0 0
      %1417 = vmatprep.subr.bf16.mxu0 0
      %1418 = vmatpush2.bf16.msra.mxu0 0
      %1419 = vmatprep.subr.bf16.mxu0 0
      %1420 = vmatpush2.bf16.msra.mxu0 0
      %1421 = vmatprep.subr.bf16.mxu0 0
      %1422 = vmatpush2.bf16.msra.mxu0 0
      %1423 = vmatprep.subr.bf16.mxu0 0
      %1424 = vmatpush2.bf16.msra.mxu0 0
      %1425 = vmatprep.mubr.bf16.mxu0 0
      %1426 = vmatmul.mubr.bf16.gmra.mxu0 %v1388
      %v1427 = vpop.f32.mrf.mxu0
      %v1428 = vadd.f32 %v1326, %v1427
      %v1429 = vpop.f32.mrf.mxu0
      %v1430 = vpop.f32.mrf.mxu0
      %v1431 = vadd.f32 %v1329, %v1430
      %v1432 = vpop.f32.mrf.mxu0
      %1433 = vmatprep.mubr.bf16.mxu0 0
      %1434 = vmatmul.mubr.bf16.gmra.mxu0 %v1271
      %v1435 = vpop.f32.mrf.mxu0
      %v1436 = vadd.f32 %v1334, %v1435
      %v1437 = vpop.f32.mrf.mxu0
      %v1438 = vpop.f32.mrf.mxu0
      %v1439 = vadd.f32 %v1337, %v1438
      %v1440 = vpop.f32.mrf.mxu0
      %1441 = vmatprep.mubr.bf16.mxu0 0
      %1442 = vmatmul.mubr.bf16.gmra.mxu0 %v1273
      %v1443 = vpop.f32.mrf.mxu0
      %v1444 = vadd.f32 %v1342, %v1443
      %v1445 = vpop.f32.mrf.mxu0
      %v1446 = vpop.f32.mrf.mxu0
      %v1447 = vadd.f32 %v1345, %v1446
      %v1448 = vpop.f32.mrf.mxu0
      %1449 = vmatprep.mubr.bf16.mxu0 0
      %1450 = vmatmul.mubr.bf16.gmra.mxu0 %v1275
      %v1451 = vpop.f32.mrf.mxu0
      %v1452 = vadd.f32 %v1350, %v1451
      %v1453 = vpop.f32.mrf.mxu0
      %v1454 = vpop.f32.mrf.mxu0
      %v1455 = vadd.f32 %v1353, %v1454
      %v1456 = vpop.f32.mrf.mxu0
      %1457 = vmatprep.mubr.bf16.mxu0 0
      %1458 = vmatmul.mubr.bf16.gmra.mxu0 %v1277
      %v1459 = vpop.f32.mrf.mxu0
      %v1460 = vadd.f32 %v1358, %v1459
      %v1461 = vpop.f32.mrf.mxu0
      %v1462 = vpop.f32.mrf.mxu0
      %v1463 = vadd.f32 %v1361, %v1462
      %v1464 = vpop.f32.mrf.mxu0
      %1465 = vmatprep.mubr.bf16.mxu0 0
      %1466 = vmatmul.mubr.bf16.gmra.mxu0 %v1279
      %v1467 = vpop.f32.mrf.mxu0
      %v1468 = vadd.f32 %v1366, %v1467
      %v1469 = vpop.f32.mrf.mxu0
      %v1470 = vpop.f32.mrf.mxu0
      %v1471 = vadd.f32 %v1369, %v1470
      %v1472 = vpop.f32.mrf.mxu0
      %1473 = vmatprep.mubr.bf16.mxu0 0
      %1474 = vmatmul.mubr.bf16.gmra.mxu0 %v1281
      %v1475 = vpop.f32.mrf.mxu0
      %v1476 = vadd.f32 %v1374, %v1475
      %v1477 = vpop.f32.mrf.mxu0
      %v1478 = vpop.f32.mrf.mxu0
      %v1479 = vadd.f32 %v1377, %v1478
      %v1480 = vpop.f32.mrf.mxu0
      %1481 = vmatprep.mubr.bf16.mxu0 0
      %1482 = vmatmul.mubr.bf16.gmra.mxu0 %v1283
      %v1483 = vpop.f32.mrf.mxu0
      %v1484 = vadd.f32 %v1382, %v1483
      %v1485 = vpop.f32.mrf.mxu0
      %v1486 = vpop.f32.mrf.mxu0
      %v1487 = vadd.f32 %v1385, %v1486
      %v1488 = vpop.f32.mrf.mxu0
      %1489 = vdwg.mxu0
      %s1490 = scalar_lea.vmem %s8, 8
      %v1491 = vld [vmem:[%s1490] sm:$0x7]
      %v1492 = vsel %vm1270, %v1266, 0
      %v1495 = vsel %vm1287, %v1491, 0
      %1497 = vmatprep.subr.bf16.mxu0 0
      %1498 = vmatpush1.bf16.msra.mxu0 0
      %1499 = vmatprep.subr.bf16.mxu0 0
      %1500 = vmatpush1.bf16.msra.mxu0 0
      %1501 = vmatprep.subr.bf16.mxu0 0
      %1502 = vmatpush1.bf16.msra.mxu0 0
      %1503 = vmatprep.subr.bf16.mxu0 0
      %1504 = vmatpush1.bf16.msra.mxu0 0
      %1505 = vmatprep.subr.bf16.mxu0 0
      %1506 = vmatpush1.bf16.msra.mxu0 0
      %1507 = vmatprep.subr.bf16.mxu0 0
      %1508 = vmatpush1.bf16.msra.mxu0 0
      %1509 = vmatprep.subr.bf16.mxu0 0
      %1510 = vmatpush1.bf16.msra.mxu0 0
      %1511 = vmatprep.subr.bf16.mxu0 0
      %1512 = vmatpush1.bf16.msra.mxu0 %v1495
      %1513 = vmatprep.subr.bf16.mxu0 0
      %1514 = vmatpush2.bf16.msra.mxu0 0
      %1515 = vmatprep.subr.bf16.mxu0 0
      %1516 = vmatpush2.bf16.msra.mxu0 0
      %1517 = vmatprep.subr.bf16.mxu0 0
      %1518 = vmatpush2.bf16.msra.mxu0 0
      %1519 = vmatprep.subr.bf16.mxu0 0
      %1520 = vmatpush2.bf16.msra.mxu0 0
      %1521 = vmatprep.subr.bf16.mxu0 0
      %1522 = vmatpush2.bf16.msra.mxu0 0
      %1523 = vmatprep.subr.bf16.mxu0 0
      %1524 = vmatpush2.bf16.msra.mxu0 0
      %1525 = vmatprep.subr.bf16.mxu0 0
      %1526 = vmatpush2.bf16.msra.mxu0 0
      %1527 = vmatprep.subr.bf16.mxu0 0
      %1528 = vmatpush2.bf16.msra.mxu0 0
      %1529 = vmatprep.mubr.bf16.mxu0 0
      %1530 = vmatmul.mubr.bf16.gmra.mxu0 %v1273
      %v1531 = vpop.f32.mrf.mxu0
      %v1532 = vadd.f32 0.0, %v1531
      %v1533 = vpop.f32.mrf.mxu0
      %v1534 = vpop.f32.mrf.mxu0
      %v1535 = vadd.f32 0.0, %v1534
      %v1536 = vpop.f32.mrf.mxu0
      %1537 = vmatprep.mubr.bf16.mxu0 0
      %1538 = vmatmul.mubr.bf16.gmra.mxu0 %v1275
      %v1539 = vpop.f32.mrf.mxu0
      %v1540 = vadd.f32 0.0, %v1539
      %v1541 = vpop.f32.mrf.mxu0
      %v1542 = vpop.f32.mrf.mxu0
      %v1543 = vadd.f32 0.0, %v1542
      %v1544 = vpop.f32.mrf.mxu0
      %1545 = vmatprep.mubr.bf16.mxu0 0
      %1546 = vmatmul.mubr.bf16.gmra.mxu0 %v1277
      %v1547 = vpop.f32.mrf.mxu0
      %v1548 = vadd.f32 0.0, %v1547
      %v1549 = vpop.f32.mrf.mxu0
      %v1550 = vpop.f32.mrf.mxu0
      %v1551 = vadd.f32 0.0, %v1550
      %v1552 = vpop.f32.mrf.mxu0
      %1553 = vmatprep.mubr.bf16.mxu0 0
      %1554 = vmatmul.mubr.bf16.gmra.mxu0 %v1279
      %v1555 = vpop.f32.mrf.mxu0
      %v1556 = vadd.f32 0.0, %v1555
      %v1557 = vpop.f32.mrf.mxu0
      %v1558 = vpop.f32.mrf.mxu0
      %v1559 = vadd.f32 0.0, %v1558
      %v1560 = vpop.f32.mrf.mxu0
      %1561 = vmatprep.mubr.bf16.mxu0 0
      %1562 = vmatmul.mubr.bf16.gmra.mxu0 %v1281
      %v1563 = vpop.f32.mrf.mxu0
      %v1564 = vadd.f32 0.0, %v1563
      %v1565 = vpop.f32.mrf.mxu0
      %v1566 = vpop.f32.mrf.mxu0
      %v1567 = vadd.f32 0.0, %v1566
      %v1568 = vpop.f32.mrf.mxu0
      %1569 = vmatprep.mubr.bf16.mxu0 0
      %1570 = vmatmul.mubr.bf16.gmra.mxu0 %v1283
      %v1571 = vpop.f32.mrf.mxu0
      %v1572 = vadd.f32 0.0, %v1571
      %v1573 = vpop.f32.mrf.mxu0
      %v1574 = vpop.f32.mrf.mxu0
      %v1575 = vadd.f32 0.0, %v1574
      %v1576 = vpop.f32.mrf.mxu0
      %1577 = vmatprep.mubr.bf16.mxu0 0
      %1578 = vmatmul.mubr.bf16.gmra.mxu0 %v1285
      %v1579 = vpop.f32.mrf.mxu0
      %v1580 = vadd.f32 0.0, %v1579
      %v1581 = vpop.f32.mrf.mxu0
      %v1582 = vpop.f32.mrf.mxu0
      %v1583 = vadd.f32 0.0, %v1582
      %v1584 = vpop.f32.mrf.mxu0
      %1585 = vmatprep.mubr.bf16.mxu0 0
      %1586 = vmatmul.mubr.bf16.gmra.mxu0 %v1492
      %v1587 = vpop.f32.mrf.mxu0
      %v1588 = vadd.f32 0.0, %v1587
      %v1589 = vpop.f32.mrf.mxu0
      %v1590 = vpop.f32.mrf.mxu0
      %v1591 = vadd.f32 0.0, %v1590
      %v1592 = vpop.f32.mrf.mxu0
      %1593 = vdwg.mxu0
      %v1594 = vadd.f32 %v1428, %v1532
      %v1595 = vadd.f32 %v1431, %v1535
      %v1596 = vadd.f32 %v1436, %v1540
      %v1597 = vadd.f32 %v1439, %v1543
      %v1598 = vadd.f32 %v1444, %v1548
      %v1599 = vadd.f32 %v1447, %v1551
      %v1600 = vadd.f32 %v1452, %v1556
      %v1601 = vadd.f32 %v1455, %v1559
      %v1602 = vadd.f32 %v1460, %v1564
      %v1603 = vadd.f32 %v1463, %v1567
      %v1604 = vadd.f32 %v1468, %v1572
      %v1605 = vadd.f32 %v1471, %v1575
      %v1606 = vadd.f32 %v1476, %v1580
      %v1607 = vadd.f32 %v1479, %v1583
      %v1608 = vadd.f32 %v1484, %v1588
      %v1609 = vadd.f32 %v1487, %v1591
      %v1610 = vld [vmem:[%s9] sm:$0x1]
      %v1612 = vlaneseq
      %v1613 = vshrl.u32 %v1612, 7
      %v1614 = vsub.s32 0, %v1613
      %v1615 = vrot.slane %v1610, %v1614
      %v1617 = vmul.f32 %v1594, %v1615
      %v1618 = vmul.f32 %v1595, %v1615
      %v1619 = vmul.f32 %v1596, %v1615
      %v1620 = vmul.f32 %v1597, %v1615
      %v1621 = vmul.f32 %v1598, %v1615
      %v1622 = vmul.f32 %v1599, %v1615
      %v1623 = vmul.f32 %v1600, %v1615
      %v1624 = vmul.f32 %v1601, %v1615
      %v1625 = vmul.f32 %v1602, %v1615
      %v1626 = vmul.f32 %v1603, %v1615
      %v1627 = vmul.f32 %v1604, %v1615
      %v1628 = vmul.f32 %v1605, %v1615
      %v1629 = vmul.f32 %v1606, %v1615
      %v1630 = vmul.f32 %v1607, %v1615
      %v1631 = vmul.f32 %v1608, %v1615
      %v1632 = vmul.f32 %v1609, %v1615
      %v1633 = vld [vmem:[%s10] sm:$0x1]
      %v1635 = vlaneseq
      %v1636 = vshrl.u32 %v1635, 7
      %v1637 = vsub.s32 0, %v1636
      %v1638 = vrot.slane %v1633, %v1637
      %v1640 = vadd.f32 %v1617, %v1638
      %v1641 = vadd.f32 %v1618, %v1638
      %v1642 = vadd.f32 %v1619, %v1638
      %v1643 = vadd.f32 %v1620, %v1638
      %v1644 = vadd.f32 %v1621, %v1638
      %v1645 = vadd.f32 %v1622, %v1638
      %v1646 = vadd.f32 %v1623, %v1638
      %v1647 = vadd.f32 %v1624, %v1638
      %v1648 = vadd.f32 %v1625, %v1638
      %v1649 = vadd.f32 %v1626, %v1638
      %v1650 = vadd.f32 %v1627, %v1638
      %v1651 = vadd.f32 %v1628, %v1638
      %v1652 = vadd.f32 %v1629, %v1638
      %v1653 = vadd.f32 %v1630, %v1638
      %v1654 = vadd.f32 %v1631, %v1638
      %v1655 = vadd.f32 %v1632, %v1638
      %v1656 = vmax.f32 %v1640, 0.0
      %v1657 = vmax.f32 %v1641, 0.0
      %v1658 = vmax.f32 %v1642, 0.0
      %v1659 = vmax.f32 %v1643, 0.0
      %v1660 = vmax.f32 %v1644, 0.0
      %v1661 = vmax.f32 %v1645, 0.0
      %v1662 = vmax.f32 %v1646, 0.0
      %v1663 = vmax.f32 %v1647, 0.0
      %v1664 = vmax.f32 %v1648, 0.0
      %v1665 = vmax.f32 %v1649, 0.0
      %v1666 = vmax.f32 %v1650, 0.0
      %v1667 = vmax.f32 %v1651, 0.0
      %v1668 = vmax.f32 %v1652, 0.0
      %v1669 = vmax.f32 %v1653, 0.0
      %v1670 = vmax.f32 %v1654, 0.0
      %v1671 = vmax.f32 %v1655, 0.0
      %v1672 = vpack.c.bf16 %v1657, %v1656
      %v1673 = vpack.c.bf16 %v1659, %v1658
      %v1674 = vpack.c.bf16 %v1661, %v1660
      %v1675 = vpack.c.bf16 %v1663, %v1662
      %v1676 = vpack.c.bf16 %v1665, %v1664
      %v1677 = vpack.c.bf16 %v1667, %v1666
      %v1678 = vpack.c.bf16 %v1669, %v1668
      %v1679 = vpack.c.bf16 %v1671, %v1670
      %v1680 = vld [vmem:[%s11] sm:$0x1]
      %v1681 = vld [vmem:[%s12] sm:$0x1]
      %v1683 = vlaneseq
      %v1684 = vshrl.u32 %v1683, 7
      %v1685 = vsub.s32 0, %v1684
      %v1686 = vrot.slane %v1681, %v1685
      %v1689 = vsel %vm1216, %v1672, 0
      %v1692 = vsel %vm1216, %v1673, 0
      %v1695 = vsel %vm1216, %v1674, 0
      %v1698 = vsel %vm1216, %v1675, 0
      %v1701 = vsel %vm1216, %v1676, 0
      %v1704 = vsel %vm1216, %v1677, 0
      %v1707 = vsel %vm1216, %v1678, 0
      %v1710 = vsel %vm1216, %v1679, 0
      %vm1712 = vcmask 1040384
      %v1714 = vsel %vm1712, %v1680, 0
      %1716 = vmatprep.subr.bf16.mxu0 0
      %1717 = vmatpush1.bf16.msra.mxu0 0
      %1718 = vmatprep.subr.bf16.mxu0 0
      %1719 = vmatpush1.bf16.msra.mxu0 0
      %1720 = vmatprep.subr.bf16.mxu0 0
      %1721 = vmatpush1.bf16.msra.mxu0 0
      %1722 = vmatprep.subr.bf16.mxu0 0
      %1723 = vmatpush1.bf16.msra.mxu0 0
      %1724 = vmatprep.subr.bf16.mxu0 0
      %1725 = vmatpush1.bf16.msra.mxu0 0
      %1726 = vmatprep.subr.bf16.mxu0 0
      %1727 = vmatpush1.bf16.msra.mxu0 0
      %1728 = vmatprep.subr.bf16.mxu0 0
      %1729 = vmatpush1.bf16.msra.mxu0 0
      %1730 = vmatprep.subr.bf16.mxu0 0
      %1731 = vmatpush1.bf16.msra.mxu0 %v1714
      %1732 = vmatprep.subr.bf16.mxu0 0
      %1733 = vmatpush2.bf16.msra.mxu0 0
      %1734 = vmatprep.subr.bf16.mxu0 0
      %1735 = vmatpush2.bf16.msra.mxu0 0
      %1736 = vmatprep.subr.bf16.mxu0 0
      %1737 = vmatpush2.bf16.msra.mxu0 0
      %1738 = vmatprep.subr.bf16.mxu0 0
      %1739 = vmatpush2.bf16.msra.mxu0 0
      %1740 = vmatprep.subr.bf16.mxu0 0
      %1741 = vmatpush2.bf16.msra.mxu0 0
      %1742 = vmatprep.subr.bf16.mxu0 0
      %1743 = vmatpush2.bf16.msra.mxu0 0
      %1744 = vmatprep.subr.bf16.mxu0 0
      %1745 = vmatpush2.bf16.msra.mxu0 0
      %1746 = vmatprep.subr.bf16.mxu0 0
      %1747 = vmatpush2.bf16.msra.mxu0 0
      %1748 = vmatprep.mubr.bf16.mxu0 0
      %1749 = vmatmul.mubr.bf16.gmra.mxu0 %v1689
      %v1750 = vpop.f32.mrf.mxu0
      %v1751 = vadd.f32 %v1686, %v1750
      %v1752 = vpop.f32.mrf.mxu0
      %v1753 = vpop.f32.mrf.mxu0
      %v1754 = vadd.f32 %v1686, %v1753
      %v1755 = vpop.f32.mrf.mxu0
      %1756 = vmatprep.mubr.bf16.mxu0 0
      %1757 = vmatmul.mubr.bf16.gmra.mxu0 %v1692
      %v1758 = vpop.f32.mrf.mxu0
      %v1759 = vadd.f32 %v1686, %v1758
      %v1760 = vpop.f32.mrf.mxu0
      %v1761 = vpop.f32.mrf.mxu0
      %v1762 = vadd.f32 %v1686, %v1761
      %v1763 = vpop.f32.mrf.mxu0
      %1764 = vmatprep.mubr.bf16.mxu0 0
      %1765 = vmatmul.mubr.bf16.gmra.mxu0 %v1695
      %v1766 = vpop.f32.mrf.mxu0
      %v1767 = vadd.f32 %v1686, %v1766
      %v1768 = vpop.f32.mrf.mxu0
      %v1769 = vpop.f32.mrf.mxu0
      %v1770 = vadd.f32 %v1686, %v1769
      %v1771 = vpop.f32.mrf.mxu0
      %1772 = vmatprep.mubr.bf16.mxu0 0
      %1773 = vmatmul.mubr.bf16.gmra.mxu0 %v1698
      %v1774 = vpop.f32.mrf.mxu0
      %v1775 = vadd.f32 %v1686, %v1774
      %v1776 = vpop.f32.mrf.mxu0
      %v1777 = vpop.f32.mrf.mxu0
      %v1778 = vadd.f32 %v1686, %v1777
      %v1779 = vpop.f32.mrf.mxu0
      %1780 = vmatprep.mubr.bf16.mxu0 0
      %1781 = vmatmul.mubr.bf16.gmra.mxu0 %v1701
      %v1782 = vpop.f32.mrf.mxu0
      %v1783 = vadd.f32 %v1686, %v1782
      %v1784 = vpop.f32.mrf.mxu0
      %v1785 = vpop.f32.mrf.mxu0
      %v1786 = vadd.f32 %v1686, %v1785
      %v1787 = vpop.f32.mrf.mxu0
      %1788 = vmatprep.mubr.bf16.mxu0 0
      %1789 = vmatmul.mubr.bf16.gmra.mxu0 %v1704
      %v1790 = vpop.f32.mrf.mxu0
      %v1791 = vadd.f32 %v1686, %v1790
      %v1792 = vpop.f32.mrf.mxu0
      %v1793 = vpop.f32.mrf.mxu0
      %v1794 = vadd.f32 %v1686, %v1793
      %v1795 = vpop.f32.mrf.mxu0
      %1796 = vmatprep.mubr.bf16.mxu0 0
      %1797 = vmatmul.mubr.bf16.gmra.mxu0 %v1707
      %v1798 = vpop.f32.mrf.mxu0
      %v1799 = vadd.f32 %v1686, %v1798
      %v1800 = vpop.f32.mrf.mxu0
      %v1801 = vpop.f32.mrf.mxu0
      %v1802 = vadd.f32 %v1686, %v1801
      %v1803 = vpop.f32.mrf.mxu0
      %1804 = vmatprep.mubr.bf16.mxu0 0
      %1805 = vmatmul.mubr.bf16.gmra.mxu0 %v1710
      %v1806 = vpop.f32.mrf.mxu0
      %v1807 = vadd.f32 %v1686, %v1806
      %v1808 = vpop.f32.mrf.mxu0
      %v1809 = vpop.f32.mrf.mxu0
      %v1810 = vadd.f32 %v1686, %v1809
      %v1811 = vpop.f32.mrf.mxu0
      %1812 = vdwg.mxu0
      %v1813 = vadd.f32 %v1751, %v626
      %v1814 = vadd.f32 %v1754, %v627
      %v1815 = vadd.f32 %v1759, %v628
      %v1816 = vadd.f32 %v1762, %v629
      %v1817 = vadd.f32 %v1767, %v630
      %v1818 = vadd.f32 %v1770, %v631
      %v1819 = vadd.f32 %v1775, %v632
      %v1820 = vadd.f32 %v1778, %v633
      %v1821 = vadd.f32 %v1783, %v634
      %v1822 = vadd.f32 %v1786, %v635
      %v1823 = vadd.f32 %v1791, %v636
      %v1824 = vadd.f32 %v1794, %v637
      %v1825 = vadd.f32 %v1799, %v638
      %v1826 = vadd.f32 %v1802, %v639
      %v1827 = vadd.f32 %v1807, %v640
      %v1828 = vadd.f32 %v1810, %v641
      %v1829 = vpack.c.bf16 %v1814, %v1813
      %v1830 = vpack.c.bf16 %v1816, %v1815
      %v1831 = vpack.c.bf16 %v1818, %v1817
      %v1832 = vpack.c.bf16 %v1820, %v1819
      %v1833 = vpack.c.bf16 %v1822, %v1821
      %v1834 = vpack.c.bf16 %v1824, %v1823
      %v1835 = vpack.c.bf16 %v1826, %v1825
      %v1836 = vpack.c.bf16 %v1828, %v1827
      %v1845 = vunpack.c.l.b16 %v1829
      %v1846 = vunpack.c.h.b16 %v1829
      %v1847 = vunpack.c.l.b16 %v1830
      %v1848 = vunpack.c.h.b16 %v1830
      %v1849 = vunpack.c.l.b16 %v1831
      %v1850 = vunpack.c.h.b16 %v1831
      %v1851 = vunpack.c.l.b16 %v1832
      %v1852 = vunpack.c.h.b16 %v1832
      %v1853 = vunpack.c.l.b16 %v1833
      %v1854 = vunpack.c.h.b16 %v1833
      %v1855 = vunpack.c.l.b16 %v1834
      %v1856 = vunpack.c.h.b16 %v1834
      %v1857 = vunpack.c.l.b16 %v1835
      %v1858 = vunpack.c.h.b16 %v1835
      %v1859 = vunpack.c.l.b16 %v1836
      %v1860 = vunpack.c.h.b16 %v1836
      %v1861 = vpack.c.b16 %v1845, %v1845
      %v1862 = vpack.c.b16 %v1846, %v1846
      %v1863 = vpack.c.b16 %v1847, %v1847
      %v1864 = vpack.c.b16 %v1848, %v1848
      %v1865 = vpack.c.b16 %v1849, %v1849
      %v1866 = vpack.c.b16 %v1850, %v1850
      %v1867 = vpack.c.b16 %v1851, %v1851
      %v1868 = vpack.c.b16 %v1852, %v1852
      %v1869 = vpack.c.b16 %v1853, %v1853
      %v1870 = vpack.c.b16 %v1854, %v1854
      %v1871 = vpack.c.b16 %v1855, %v1855
      %v1872 = vpack.c.b16 %v1856, %v1856
      %v1873 = vpack.c.b16 %v1857, %v1857
      %v1874 = vpack.c.b16 %v1858, %v1858
      %v1875 = vpack.c.b16 %v1859, %v1859
      %v1876 = vpack.c.b16 %v1860, %v1860
      %vm1893 = vcmask 27648
      %1894 = vst.msk [vmem:[%s607] sm:$0xf] %vm1893, %v1861
      %1895 = vst.msk [vmem:[%s607 + $0x4] sm:$0xf] %vm1893, %v1862
      %1896 = vst.msk [vmem:[%s607 + $0x8] sm:$0xf] %vm1893, %v1863
      %1897 = vst.msk [vmem:[%s607 + $0xc] sm:$0xf] %vm1893, %v1864
      %1898 = vst.msk [vmem:[%s607 + $0x10] sm:$0xf] %vm1893, %v1865
      %1899 = vst.msk [vmem:[%s607 + $0x14] sm:$0xf] %vm1893, %v1866
      %1900 = vst.msk [vmem:[%s607 + $0x18] sm:$0xf] %vm1893, %v1867
      %1901 = vst.msk [vmem:[%s607 + $0x1c] sm:$0xf] %vm1893, %v1868
      %1902 = vst.msk [vmem:[%s607 + $0x20] sm:$0xf] %vm1893, %v1869
      %1903 = vst.msk [vmem:[%s607 + $0x24] sm:$0xf] %vm1893, %v1870
      %1904 = vst.msk [vmem:[%s607 + $0x28] sm:$0xf] %vm1893, %v1871
      %1905 = vst.msk [vmem:[%s607 + $0x2c] sm:$0xf] %vm1893, %v1872
      %1906 = vst.msk [vmem:[%s607 + $0x30] sm:$0xf] %vm1893, %v1873
      %1907 = vst.msk [vmem:[%s607 + $0x34] sm:$0xf] %vm1893, %v1874
      %1908 = vst.msk [vmem:[%s607 + $0x38] sm:$0xf] %vm1893, %v1875
      %1909 = vst.msk [vmem:[%s607 + $0x3c] sm:$0xf] %vm1893, %v1876
      %s1910 = smul.u32 8, %s29
      %p1911 = scmp.lt.s32.totalorder %s28, 1
      %s1912 = scalar_select %p1911, %s28, 1
      %p1913 = scmp.lt.s32.totalorder %s1910, 15
      %s1914 = scalar_select %p1913, %s1910, 15
      %s1915 = smul.addr %s1914, 2
      %s1916 = smul.addr %s1912, 32
      %s1917 = sadd.s32 %s1915, %s1916
      %s1918 = smul.addr %s1917, 4
      %s1919 = scalar_lea.vmem %s13, %s1918
      // Predicated region
      $region73: #{tpu_custom_call.1} parent=71 // pred_check
        %p1920 = pneg %p366
      $region74: #{tpu_custom_call.1} parent=71 // pred_check_branch
        %1922 = sbr.rel (%p1920) target = $region76
      $region75: #{tpu_custom_call.1} parent=71 // pred_region
        %s1923 = smul.u32 8, %s29
      $region76: #{tpu_custom_call.1} parent=71 // pred_fallthru
        _
    $region72: #{tpu_custom_call.1} parent=5 // pred_fallthru
      _
    %p1924 = scmp.le.s32.totalorder 2, %s19
    // Predicated region
    $region77: #{tpu_custom_call.1} parent=5 // pred_check
      %p1925 = pneg %p1924
    $region78: #{tpu_custom_call.1} parent=5 // pred_check_branch
      %1927 = sbr.rel (%p1925) target = $region80
    $region79: #{tpu_custom_call.1} parent=5 // pred_region
      %s1928 = ssub.s32 %s19, 2
      // Predicated region
      $region81: #{tpu_custom_call.1} parent=79 // pred_check
        %p1929 = pneg %p372
      $region82: #{tpu_custom_call.1} parent=79 // pred_check_branch
        %1931 = sbr.rel (%p1929) target = $region84
      $region83: #{tpu_custom_call.1} parent=79 // pred_region
        %s1932 = smul.u32 8, %s31
        %p1933 = scmp.lt.s32.totalorder %s30, 1
        %s1934 = scalar_select %p1933, %s30, 1
        %p1935 = scmp.lt.s32.totalorder %s1932, 15
        %s1936 = scalar_select %p1935, %s1932, 15
        %s1937 = smul.addr %s1936, 2
        %s1938 = smul.addr %s1934, 32
        %s1939 = sadd.s32 %s1937, %s1938
        %s1940 = smul.addr %s1939, 4
        %s1941 = scalar_lea.vmem %s13, %s1940
      $region84: #{tpu_custom_call.1} parent=79 // pred_fallthru
        _
    $region80: #{tpu_custom_call.1} parent=5 // pred_fallthru
      _
  $region6: #{tpu_custom_call.1} parent=0 // loop_footer
    %s23 = sadd.s32 1, %s19
  $region7: #{tpu_custom_call.1} parent=0 // loop_footer_branch
    %18 = sbr.rel target = $region3
  $region8: #{tpu_custom_call.1} parent=0 // loop_exit
    _

</llo_original>
